<compile_context>
chip_gen: v6e
topology: v6e:2x2x1
jax: 0.10.0
libtpu: 0.0.40
codegen_flags: <defaults>
</compile_context>

<pallas_src>
import jax
import jax.numpy as jnp
from jax.experimental import pallas as pl
from jax.experimental.pallas import tpu as pltpu

EPS = 1e-5  # nn.LayerNorm default


def docqa_kernel(doc_ref, q_ref, dw1_ref, qw1_ref, dw2_ref, qw2_ref,
                 cw1d_ref, cw1q_ref, vec_ref, out_ref):
    vec = vec_ref[...]                         # (11, H) f32 packed small vectors
    db1, qb1 = vec[0:1, :], vec[1:2, :]        # encoder Linear-1 biases
    db2, qb2 = vec[2:3, :], vec[3:4, :]        # encoder Linear-2 biases
    dg, qg = vec[4:5, :], vec[5:6, :]          # LayerNorm gammas
    dbt, qbt = vec[6:7, :], vec[7:8, :]        # LayerNorm betas
    cb1 = vec[8:9, :]                          # classifier bias 1   (1, H)
    cw2_row = vec[9:10, :]                     # classifier weight 2 (1, H)
    cb2 = vec[10:11, 0:1]                      # classifier bias 2   (1, 1)

    def encoder(x_ref, w1_ref, b1, w2_ref, b2, g, bt):
        # Linear(E->H) + ReLU  (Dropout is identity in eval mode)
        h = jnp.dot(x_ref[...], w1_ref[...],
                    preferred_element_type=jnp.float32) + b1
        h = jnp.maximum(h, 0.0)
        # Linear(H->H)
        h2 = jnp.dot(h.astype(jnp.bfloat16), w2_ref[...],
                     preferred_element_type=jnp.float32) + b2
        # LayerNorm, two-pass (center before squaring), f32 math.
        mean = jnp.mean(h2, axis=-1, keepdims=True)
        xc = h2 - mean
        var = jnp.mean(xc * xc, axis=-1, keepdims=True)
        return xc * jax.lax.rsqrt(var + EPS) * g + bt

    d_ln = encoder(doc_ref, dw1_ref, db1, dw2_ref, db2, dg, dbt)
    q_ln = encoder(q_ref, qw1_ref, qb1, qw2_ref, qb2, qg, qbt)

    # relevance_classifier Linear(2H->H): split weight => no in-kernel concat.
    c1 = (jnp.dot(d_ln.astype(jnp.bfloat16), cw1d_ref[...],
                  preferred_element_type=jnp.float32)
          + jnp.dot(q_ln.astype(jnp.bfloat16), cw1q_ref[...],
                    preferred_element_type=jnp.float32)
          + cb1)
    c1 = jnp.maximum(c1, 0.0)
    # Final Linear(H->1) as VPU multiply + lane reduction (no degenerate N=1 matmul).
    out_ref[...] = jnp.sum(c1 * cw2_row, axis=-1, keepdims=True) + cb2


def init_params(key, embed_dim, hidden_dim):
    """Deterministic params in PyTorch-equivalent shapes, pre-transposed to (in, out)."""
    ks = jax.random.split(key, 10)
    s = 0.05

    def lin(k, din, dout):
        kw, kb = jax.random.split(k)
        w = jax.random.normal(kw, (din, dout), jnp.float32) * s
        b = jax.random.normal(kb, (dout,), jnp.float32) * s
        return w, b

    dw1, db1 = lin(ks[0], embed_dim, hidden_dim)
    dw2, db2 = lin(ks[1], hidden_dim, hidden_dim)
    dg = 1.0 + jax.random.normal(ks[2], (hidden_dim,), jnp.float32) * s
    dbt = jax.random.normal(ks[3], (hidden_dim,), jnp.float32) * s
    qw1, qb1 = lin(ks[4], embed_dim, hidden_dim)
    qw2, qb2 = lin(ks[5], hidden_dim, hidden_dim)
    qg = 1.0 + jax.random.normal(ks[6], (hidden_dim,), jnp.float32) * s
    qbt = jax.random.normal(ks[7], (hidden_dim,), jnp.float32) * s
    cw1, cb1 = lin(ks[8], 2 * hidden_dim, hidden_dim)
    cw2, cb2 = lin(ks[9], hidden_dim, 1)
    return (dw1, db1, dw2, db2, dg, dbt,
            qw1, qb1, qw2, qb2, qg, qbt,
            cw1, cb1, cw2, cb2)


def pack_params(params):
    """Kernel operands: per-encoder bf16 weights, split classifier weight, one f32 slab."""
    (dw1, db1, dw2, db2, dg, dbt,
     qw1, qb1, qw2, qb2, qg, qbt,
     cw1, cb1, cw2, cb2) = params
    E, H = dw1.shape

    cw1_doc = cw1[:H, :]          # combined[:, :H] rows  -> doc half
    cw1_q = cw1[H:, :]            # combined[:, H:] rows  -> question half

    vec = jnp.zeros((11, H), jnp.float32)
    vec = vec.at[0].set(db1).at[1].set(qb1)
    vec = vec.at[2].set(db2).at[3].set(qb2)
    vec = vec.at[4].set(dg).at[5].set(qg)
    vec = vec.at[6].set(dbt).at[7].set(qbt)
    vec = vec.at[8].set(cb1)
    vec = vec.at[9].set(cw2.reshape(-1))
    vec = vec.at[10, 0].set(cb2[0])

    bf = jnp.bfloat16
    return (dw1.astype(bf), qw1.astype(bf), dw2.astype(bf), qw2.astype(bf),
            cw1_doc.astype(bf), cw1_q.astype(bf), vec)


def document_qa_forward(doc_emb, q_emb, packed, *, tile_b=512):
    """Returns relevance scores of shape (B,) — matches relevance_scores.view(-1)."""
    dw1, qw1, dw2, qw2, cw1d, cw1q, vec = packed
    B, E = doc_emb.shape

    # Multiple of 16 (bf16 sublane packing); cap so the grid has >= 2 steps when
    # the batch allows -> both TensorCores used on v7x via the "parallel" axis.
    tile_b = max(16, (tile_b // 16) * 16)
    tile_b = min(tile_b, max(16, pl.cdiv(pl.cdiv(B, 2), 16) * 16))
    B_pad = pl.cdiv(B, tile_b) * tile_b

    # Stream activations as bf16 (they only feed bf16 matmuls): halves DMA bytes.
    doc = doc_emb.astype(jnp.bfloat16)
    q = q_emb.astype(jnp.bfloat16)
    if B_pad != B:  # only when B % tile_b != 0, and only on the bf16 halves
        doc = jnp.pad(doc, ((0, B_pad - B), (0, 0)))
        q = jnp.pad(q, ((0, B_pad - B), (0, 0)))

    const = lambda i: (0, 0)  # weights stay resident in VMEM across the grid
    scores = pl.pallas_call(
        docqa_kernel,
        out_shape=jax.ShapeDtypeStruct((B_pad, 1), jnp.float32),
        grid=(B_pad // tile_b,),
        in_specs=[
            pl.BlockSpec((tile_b, E), lambda i: (i, 0)),   # doc embeddings
            pl.BlockSpec((tile_b, E), lambda i: (i, 0)),   # question embeddings
            pl.BlockSpec(dw1.shape, const),
            pl.BlockSpec(qw1.shape, const),
            pl.BlockSpec(dw2.shape, const),
            pl.BlockSpec(qw2.shape, const),
            pl.BlockSpec(cw1d.shape, const),
            pl.BlockSpec(cw1q.shape, const),
            pl.BlockSpec(vec.shape, const),
        ],
        out_specs=pl.BlockSpec((tile_b, 1), lambda i: (i, 0)),
        compiler_params=pltpu.CompilerParams(
            dimension_semantics=("parallel",),
            # Actual usage is ~10-15 MiB at tile_b=512, H=384 (weights + double
            # buffers + f32 intermediates) — fits v7x's 64 MiB per-TC VMEM.
            vmem_limit_bytes=64 * 1024 * 1024),
    )(doc, q, dw1, qw1, dw2, qw2, cw1d, cw1q, vec)
    return scores.reshape(-1)[:B]


def reference_forward(doc_emb, q_emb, params):
    """Pure-JAX f32 reference for verification."""
    (dw1, db1, dw2, db2, dg, dbt,
     qw1, qb1, qw2, qb2, qg, qbt,
     cw1, cb1, cw2, cb2) = params

    def proj(x, w1, b1, w2, b2, g, bt):
        h = jnp.maximum(x @ w1 + b1, 0.0)
        h2 = h @ w2 + b2
        m = jnp.mean(h2, axis=-1, keepdims=True)
        v = jnp.mean((h2 - m) ** 2, axis=-1, keepdims=True)
        return (h2 - m) / jnp.sqrt(v + EPS) * g + bt

    d = proj(doc_emb, dw1, db1, dw2, db2, dg, dbt)
    q = proj(q_emb, qw1, qb1, qw2, qb2, qg, qbt)
    comb = jnp.concatenate([d, q], axis=1)
    h = jnp.maximum(comb @ cw1 + cb1, 0.0)
    return (h @ cw2 + cb2).reshape(-1)


if __name__ == "__main__":
    B = 45            # number of (document_section, question) pairs (non-multiple of 16)
    EMBED_DIM = 128   # sentence-embedding dim (small stand-in for MiniLM's 384)
    HIDDEN_DIM = 128  # hidden_dim (small stand-in for 384)

    key = jax.random.PRNGKey(0)
    k_doc, k_q, k_param = jax.random.split(key, 3)

    # Stand-ins for SentenceTransformer.encode(...) outputs.
    doc_emb = jax.random.normal(k_doc, (B, EMBED_DIM), jnp.float32)
    q_emb = jax.random.normal(k_q, (B, EMBED_DIM), jnp.float32)

    params = init_params(k_param, EMBED_DIM, HIDDEN_DIM)
    packed = pack_params(params)

    # tile_b=16 => grid=(3,) with padded last tile: exercises pipelining + padding.
    scores = document_qa_forward(doc_emb, q_emb, packed, tile_b=16)
    jax.block_until_ready(scores)

    ref = reference_forward(doc_emb, q_emb, params)
    assert scores.shape == (B,)
    # bf16 matmul operands (f32 accumulation) in the kernel => loosened tolerance
    # vs the f32 reference; a deliberate precision/perf choice for a ranking head.
    assert jnp.allclose(scores, ref, atol=5e-2, rtol=5e-2), (
        jnp.max(jnp.abs(scores - ref)), scores, ref)

    print("KERNEL_OK")
</pallas_src>

<mosaic_0001>
module attributes {stable_mosaic.version = 11 : i64} {
  func.func @docqa_kernel(%arg0: i32, %arg1: memref<16x128xbf16, #tpu.memory_space<vmem>>, %arg2: memref<16x128xbf16, #tpu.memory_space<vmem>>, %arg3: memref<128x128xbf16, #tpu.memory_space<vmem>>, %arg4: memref<128x128xbf16, #tpu.memory_space<vmem>>, %arg5: memref<128x128xbf16, #tpu.memory_space<vmem>>, %arg6: memref<128x128xbf16, #tpu.memory_space<vmem>>, %arg7: memref<128x128xbf16, #tpu.memory_space<vmem>>, %arg8: memref<128x128xbf16, #tpu.memory_space<vmem>>, %arg9: memref<11x128xf32, #tpu.memory_space<vmem>>, %arg10: memref<16x1xf32, #tpu.memory_space<vmem>>) attributes {dimension_semantics = [#tpu.dimension_semantics<parallel>], iteration_bounds = array<i64: 3>, scalar_prefetch = 0 : i64, scratch_operands = 0 : i64, tpu.core_type = #tpu.core_type<tc>, window_params = [{transform_indices = @transform_0, window_bounds = array<i64: 16, 128>}, {transform_indices = @transform_1, window_bounds = array<i64: 16, 128>}, {pipeline_mode = #tpu.pipeline_mode<synchronous>, transform_indices = @transform_2, window_bounds = array<i64: 128, 128>}, {pipeline_mode = #tpu.pipeline_mode<synchronous>, transform_indices = @transform_3, window_bounds = array<i64: 128, 128>}, {pipeline_mode = #tpu.pipeline_mode<synchronous>, transform_indices = @transform_4, window_bounds = array<i64: 128, 128>}, {pipeline_mode = #tpu.pipeline_mode<synchronous>, transform_indices = @transform_5, window_bounds = array<i64: 128, 128>}, {pipeline_mode = #tpu.pipeline_mode<synchronous>, transform_indices = @transform_6, window_bounds = array<i64: 128, 128>}, {pipeline_mode = #tpu.pipeline_mode<synchronous>, transform_indices = @transform_7, window_bounds = array<i64: 128, 128>}, {pipeline_mode = #tpu.pipeline_mode<synchronous>, transform_indices = @transform_8, window_bounds = array<i64: 11, 128>}, {transform_indices = @transform_9, window_bounds = array<i64: 16, 1>}]} {
    %c0 = arith.constant 0 : index
    %c0_0 = arith.constant 0 : index
    %0 = vector.load %arg9[%c0, %c0_0] : memref<11x128xf32, #tpu.memory_space<vmem>>, vector<11x128xf32>
    %1 = vector.extract_strided_slice %0 {offsets = [0, 0], sizes = [1, 128], strides = [1, 1]} : vector<11x128xf32> to vector<1x128xf32>
    %2 = vector.extract_strided_slice %0 {offsets = [1, 0], sizes = [1, 128], strides = [1, 1]} : vector<11x128xf32> to vector<1x128xf32>
    %3 = vector.extract_strided_slice %0 {offsets = [2, 0], sizes = [1, 128], strides = [1, 1]} : vector<11x128xf32> to vector<1x128xf32>
    %4 = vector.extract_strided_slice %0 {offsets = [3, 0], sizes = [1, 128], strides = [1, 1]} : vector<11x128xf32> to vector<1x128xf32>
    %5 = vector.extract_strided_slice %0 {offsets = [4, 0], sizes = [1, 128], strides = [1, 1]} : vector<11x128xf32> to vector<1x128xf32>
    %6 = vector.extract_strided_slice %0 {offsets = [5, 0], sizes = [1, 128], strides = [1, 1]} : vector<11x128xf32> to vector<1x128xf32>
    %7 = vector.extract_strided_slice %0 {offsets = [6, 0], sizes = [1, 128], strides = [1, 1]} : vector<11x128xf32> to vector<1x128xf32>
    %8 = vector.extract_strided_slice %0 {offsets = [7, 0], sizes = [1, 128], strides = [1, 1]} : vector<11x128xf32> to vector<1x128xf32>
    %9 = vector.extract_strided_slice %0 {offsets = [8, 0], sizes = [1, 128], strides = [1, 1]} : vector<11x128xf32> to vector<1x128xf32>
    %10 = vector.extract_strided_slice %0 {offsets = [9, 0], sizes = [1, 128], strides = [1, 1]} : vector<11x128xf32> to vector<1x128xf32>
    %11 = vector.extract_strided_slice %0 {offsets = [10, 0], sizes = [1, 1], strides = [1, 1]} : vector<11x128xf32> to vector<1x1xf32>
    %c0_1 = arith.constant 0 : index
    %c0_2 = arith.constant 0 : index
    %12 = vector.load %arg1[%c0_1, %c0_2] : memref<16x128xbf16, #tpu.memory_space<vmem>>, vector<16x128xbf16>
    %c0_3 = arith.constant 0 : index
    %c0_4 = arith.constant 0 : index
    %13 = vector.load %arg3[%c0_3, %c0_4] : memref<128x128xbf16, #tpu.memory_space<vmem>>, vector<128x128xbf16>
    %cst = arith.constant dense<0.000000e+00> : vector<16x128xf32>
    %14 = tpu.matmul %12, %13, %cst {dimension_numbers = #tpu.dot_dimension_numbers<[1], [0], [0], [1], [0, 0, 1, 1], [], []>} : vector<16x128xbf16>, vector<128x128xbf16>, vector<16x128xf32> -> vector<16x128xf32>
    %15 = vector.broadcast %1 : vector<1x128xf32> to vector<16x128xf32>
    %16 = arith.addf %14, %15 : vector<16x128xf32>
    %cst_5 = arith.constant 0.000000e+00 : f32
    %17 = vector.broadcast %cst_5 : f32 to vector<16x128xf32>
    %18 = arith.maximumf %16, %17 : vector<16x128xf32>
    %19 = arith.truncf %18 : vector<16x128xf32> to vector<16x128xbf16>
    %c0_6 = arith.constant 0 : index
    %c0_7 = arith.constant 0 : index
    %20 = vector.load %arg5[%c0_6, %c0_7] : memref<128x128xbf16, #tpu.memory_space<vmem>>, vector<128x128xbf16>
    %cst_8 = arith.constant dense<0.000000e+00> : vector<16x128xf32>
    %21 = tpu.matmul %19, %20, %cst_8 {dimension_numbers = #tpu.dot_dimension_numbers<[1], [0], [0], [1], [0, 0, 1, 1], [], []>} : vector<16x128xbf16>, vector<128x128xbf16>, vector<16x128xf32> -> vector<16x128xf32>
    %22 = vector.broadcast %3 : vector<1x128xf32> to vector<16x128xf32>
    %23 = arith.addf %21, %22 : vector<16x128xf32>
    %cst_9 = arith.constant dense<0.000000e+00> : vector<16xf32>
    %24 = vector.multi_reduction <add>, %23, %cst_9 [1] : vector<16x128xf32> to vector<16xf32>
    %25 = vector.shape_cast %24 : vector<16xf32> to vector<16x1xf32>
    %cst_10 = arith.constant 1.280000e+02 : f32
    %26 = vector.broadcast %cst_10 : f32 to vector<16x1xf32>
    %27 = arith.divf %25, %26 : vector<16x1xf32>
    %28 = vector.broadcast %27 : vector<16x1xf32> to vector<16x128xf32>
    %29 = arith.subf %23, %28 : vector<16x128xf32>
    %30 = arith.mulf %29, %29 : vector<16x128xf32>
    %cst_11 = arith.constant dense<0.000000e+00> : vector<16xf32>
    %31 = vector.multi_reduction <add>, %30, %cst_11 [1] : vector<16x128xf32> to vector<16xf32>
    %32 = vector.shape_cast %31 : vector<16xf32> to vector<16x1xf32>
    %cst_12 = arith.constant 1.280000e+02 : f32
    %33 = vector.broadcast %cst_12 : f32 to vector<16x1xf32>
    %34 = arith.divf %32, %33 : vector<16x1xf32>
    %cst_13 = arith.constant 9.99999974E-6 : f32
    %35 = vector.broadcast %cst_13 : f32 to vector<16x1xf32>
    %36 = arith.addf %34, %35 : vector<16x1xf32>
    %37 = math.rsqrt %36 : vector<16x1xf32>
    %38 = vector.broadcast %37 : vector<16x1xf32> to vector<16x128xf32>
    %39 = arith.mulf %29, %38 : vector<16x128xf32>
    %40 = vector.broadcast %5 : vector<1x128xf32> to vector<16x128xf32>
    %41 = arith.mulf %39, %40 : vector<16x128xf32>
    %42 = vector.broadcast %7 : vector<1x128xf32> to vector<16x128xf32>
    %43 = arith.addf %41, %42 : vector<16x128xf32>
    %c0_14 = arith.constant 0 : index
    %c0_15 = arith.constant 0 : index
    %44 = vector.load %arg2[%c0_14, %c0_15] : memref<16x128xbf16, #tpu.memory_space<vmem>>, vector<16x128xbf16>
    %c0_16 = arith.constant 0 : index
    %c0_17 = arith.constant 0 : index
    %45 = vector.load %arg4[%c0_16, %c0_17] : memref<128x128xbf16, #tpu.memory_space<vmem>>, vector<128x128xbf16>
    %cst_18 = arith.constant dense<0.000000e+00> : vector<16x128xf32>
    %46 = tpu.matmul %44, %45, %cst_18 {dimension_numbers = #tpu.dot_dimension_numbers<[1], [0], [0], [1], [0, 0, 1, 1], [], []>} : vector<16x128xbf16>, vector<128x128xbf16>, vector<16x128xf32> -> vector<16x128xf32>
    %47 = vector.broadcast %2 : vector<1x128xf32> to vector<16x128xf32>
    %48 = arith.addf %46, %47 : vector<16x128xf32>
    %cst_19 = arith.constant 0.000000e+00 : f32
    %49 = vector.broadcast %cst_19 : f32 to vector<16x128xf32>
    %50 = arith.maximumf %48, %49 : vector<16x128xf32>
    %51 = arith.truncf %50 : vector<16x128xf32> to vector<16x128xbf16>
    %c0_20 = arith.constant 0 : index
    %c0_21 = arith.constant 0 : index
    %52 = vector.load %arg6[%c0_20, %c0_21] : memref<128x128xbf16, #tpu.memory_space<vmem>>, vector<128x128xbf16>
    %cst_22 = arith.constant dense<0.000000e+00> : vector<16x128xf32>
    %53 = tpu.matmul %51, %52, %cst_22 {dimension_numbers = #tpu.dot_dimension_numbers<[1], [0], [0], [1], [0, 0, 1, 1], [], []>} : vector<16x128xbf16>, vector<128x128xbf16>, vector<16x128xf32> -> vector<16x128xf32>
    %54 = vector.broadcast %4 : vector<1x128xf32> to vector<16x128xf32>
    %55 = arith.addf %53, %54 : vector<16x128xf32>
    %cst_23 = arith.constant dense<0.000000e+00> : vector<16xf32>
    %56 = vector.multi_reduction <add>, %55, %cst_23 [1] : vector<16x128xf32> to vector<16xf32>
    %57 = vector.shape_cast %56 : vector<16xf32> to vector<16x1xf32>
    %cst_24 = arith.constant 1.280000e+02 : f32
    %58 = vector.broadcast %cst_24 : f32 to vector<16x1xf32>
    %59 = arith.divf %57, %58 : vector<16x1xf32>
    %60 = vector.broadcast %59 : vector<16x1xf32> to vector<16x128xf32>
    %61 = arith.subf %55, %60 : vector<16x128xf32>
    %62 = arith.mulf %61, %61 : vector<16x128xf32>
    %cst_25 = arith.constant dense<0.000000e+00> : vector<16xf32>
    %63 = vector.multi_reduction <add>, %62, %cst_25 [1] : vector<16x128xf32> to vector<16xf32>
    %64 = vector.shape_cast %63 : vector<16xf32> to vector<16x1xf32>
    %cst_26 = arith.constant 1.280000e+02 : f32
    %65 = vector.broadcast %cst_26 : f32 to vector<16x1xf32>
    %66 = arith.divf %64, %65 : vector<16x1xf32>
    %cst_27 = arith.constant 9.99999974E-6 : f32
    %67 = vector.broadcast %cst_27 : f32 to vector<16x1xf32>
    %68 = arith.addf %66, %67 : vector<16x1xf32>
    %69 = math.rsqrt %68 : vector<16x1xf32>
    %70 = vector.broadcast %69 : vector<16x1xf32> to vector<16x128xf32>
    %71 = arith.mulf %61, %70 : vector<16x128xf32>
    %72 = vector.broadcast %6 : vector<1x128xf32> to vector<16x128xf32>
    %73 = arith.mulf %71, %72 : vector<16x128xf32>
    %74 = vector.broadcast %8 : vector<1x128xf32> to vector<16x128xf32>
    %75 = arith.addf %73, %74 : vector<16x128xf32>
    %76 = arith.truncf %43 : vector<16x128xf32> to vector<16x128xbf16>
    %c0_28 = arith.constant 0 : index
    %c0_29 = arith.constant 0 : index
    %77 = vector.load %arg7[%c0_28, %c0_29] : memref<128x128xbf16, #tpu.memory_space<vmem>>, vector<128x128xbf16>
    %cst_30 = arith.constant dense<0.000000e+00> : vector<16x128xf32>
    %78 = tpu.matmul %76, %77, %cst_30 {dimension_numbers = #tpu.dot_dimension_numbers<[1], [0], [0], [1], [0, 0, 1, 1], [], []>} : vector<16x128xbf16>, vector<128x128xbf16>, vector<16x128xf32> -> vector<16x128xf32>
    %79 = arith.truncf %75 : vector<16x128xf32> to vector<16x128xbf16>
    %c0_31 = arith.constant 0 : index
    %c0_32 = arith.constant 0 : index
    %80 = vector.load %arg8[%c0_31, %c0_32] : memref<128x128xbf16, #tpu.memory_space<vmem>>, vector<128x128xbf16>
    %cst_33 = arith.constant dense<0.000000e+00> : vector<16x128xf32>
    %81 = tpu.matmul %79, %80, %cst_33 {dimension_numbers = #tpu.dot_dimension_numbers<[1], [0], [0], [1], [0, 0, 1, 1], [], []>} : vector<16x128xbf16>, vector<128x128xbf16>, vector<16x128xf32> -> vector<16x128xf32>
    %82 = arith.addf %78, %81 : vector<16x128xf32>
    %83 = vector.broadcast %9 : vector<1x128xf32> to vector<16x128xf32>
    %84 = arith.addf %82, %83 : vector<16x128xf32>
    %cst_34 = arith.constant 0.000000e+00 : f32
    %85 = vector.broadcast %cst_34 : f32 to vector<16x128xf32>
    %86 = arith.maximumf %84, %85 : vector<16x128xf32>
    %87 = vector.broadcast %10 : vector<1x128xf32> to vector<16x128xf32>
    %88 = arith.mulf %86, %87 : vector<16x128xf32>
    %cst_35 = arith.constant dense<0.000000e+00> : vector<16xf32>
    %89 = vector.multi_reduction <add>, %88, %cst_35 [1] : vector<16x128xf32> to vector<16xf32>
    %90 = vector.shape_cast %89 : vector<16xf32> to vector<16x1xf32>
    %91 = vector.broadcast %11 : vector<1x1xf32> to vector<16x1xf32>
    %92 = arith.addf %90, %91 : vector<16x1xf32>
    %c0_36 = arith.constant 0 : index
    %c0_37 = arith.constant 0 : index
    %93 = vector.load %arg10[%c0_36, %c0_37] : memref<16x1xf32, #tpu.memory_space<vmem>>, vector<16x1xf32>
    tpu.vector_store %arg10[%c0_36, %c0_37], %92 {strides = array<i32>} : memref<16x1xf32, #tpu.memory_space<vmem>>, vector<16x1xf32>,
    return
  }
  func.func @transform_0(%arg0: i32) -> (i32, i32) {
    %c0_i32 = arith.constant 0 : i32
    %c0_i32_0 = arith.constant 0 : i32
    return %arg0, %c0_i32 : i32, i32
  }
  func.func @transform_1(%arg0: i32) -> (i32, i32) {
    %c0_i32 = arith.constant 0 : i32
    %c0_i32_0 = arith.constant 0 : i32
    return %arg0, %c0_i32 : i32, i32
  }
  func.func @transform_2(%arg0: i32) -> (i32, i32) {
    %c0_i32 = arith.constant 0 : i32
    %c0_i32_0 = arith.constant 0 : i32
    %c0_i32_1 = arith.constant 0 : i32
    return %c0_i32, %c0_i32_0 : i32, i32
  }
  func.func @transform_3(%arg0: i32) -> (i32, i32) {
    %c0_i32 = arith.constant 0 : i32
    %c0_i32_0 = arith.constant 0 : i32
    %c0_i32_1 = arith.constant 0 : i32
    return %c0_i32, %c0_i32_0 : i32, i32
  }
  func.func @transform_4(%arg0: i32) -> (i32, i32) {
    %c0_i32 = arith.constant 0 : i32
    %c0_i32_0 = arith.constant 0 : i32
    %c0_i32_1 = arith.constant 0 : i32
    return %c0_i32, %c0_i32_0 : i32, i32
  }
  func.func @transform_5(%arg0: i32) -> (i32, i32) {
    %c0_i32 = arith.constant 0 : i32
    %c0_i32_0 = arith.constant 0 : i32
    %c0_i32_1 = arith.constant 0 : i32
    return %c0_i32, %c0_i32_0 : i32, i32
  }
  func.func @transform_6(%arg0: i32) -> (i32, i32) {
    %c0_i32 = arith.constant 0 : i32
    %c0_i32_0 = arith.constant 0 : i32
    %c0_i32_1 = arith.constant 0 : i32
    return %c0_i32, %c0_i32_0 : i32, i32
  }
  func.func @transform_7(%arg0: i32) -> (i32, i32) {
    %c0_i32 = arith.constant 0 : i32
    %c0_i32_0 = arith.constant 0 : i32
    %c0_i32_1 = arith.constant 0 : i32
    return %c0_i32, %c0_i32_0 : i32, i32
  }
  func.func @transform_8(%arg0: i32) -> (i32, i32) {
    %c0_i32 = arith.constant 0 : i32
    %c0_i32_0 = arith.constant 0 : i32
    %c0_i32_1 = arith.constant 0 : i32
    return %c0_i32, %c0_i32_0 : i32, i32
  }
  func.func @transform_9(%arg0: i32) -> (i32, i32) {
    %c0_i32 = arith.constant 0 : i32
    %c0_i32_0 = arith.constant 0 : i32
    return %arg0, %c0_i32 : i32, i32
  }
}

</mosaic_0001>

<llo_original>
// kernel: tpu_custom_call.1
$region0: #{tpu_custom_call.1}
  #allocation0 [shape = 'u32[]', space=smem, size = 0x4, offset = 0x4, fixed_abs, tag = 'smem constant byte address 0x4 - core index']
  #allocation1 [shape = 'u32[144,128]{1,0:T(1,128)}', space=vmem, size = 0x12000, scoped, tag = 'internal scratch']
  %s0 = inlined_call_operand.hbm [shape: bf16[48,128], index: 0, kind: input, shape index: {}]
  %s1 = inlined_call_operand.hbm [shape: bf16[48,128], index: 1, kind: input, shape index: {}]
  %s2 = inlined_call_operand.hbm [shape: bf16[128,128], index: 2, kind: input, shape index: {}]
  %s3 = inlined_call_operand.hbm [shape: bf16[128,128], index: 3, kind: input, shape index: {}]
  %s4 = inlined_call_operand.hbm [shape: bf16[128,128], index: 4, kind: input, shape index: {}]
  %s5 = inlined_call_operand.hbm [shape: bf16[128,128], index: 5, kind: input, shape index: {}]
  %s6 = inlined_call_operand.hbm [shape: bf16[128,128], index: 6, kind: input, shape index: {}]
  %s7 = inlined_call_operand.hbm [shape: bf16[128,128], index: 7, kind: input, shape index: {}]
  %s8 = inlined_call_operand.hbm [shape: f32[11,128], index: 8, kind: input, shape index: {}]
  %s9 = inlined_call_operand.vmem [shape: f32[48,1], index: 9, kind: output, shape index: {}]
  %s10 = sld [smem:[#allocation0]]
  $region105: #{tpu_custom_call.1} parent=0
    _
  %s12 = ssub.s32 1, %s10
  %s13 = scalar_select 0, %s12, %s10
  $region1: #{tpu_custom_call.1} parent=0
    #allocation2 [shape = 'u8[8192]{0}', space=vmem, size = 0x2000, scoped, tag = 'input window, operand 0']
    #allocation3 [shape = 's32[2]{0}', space=sflag, size = 0x8, scoped, tag = 'scoped memory for tpu_custom_call.1']
    #allocation4 [shape = 'u8[8192]{0}', space=vmem, size = 0x2000, scoped, tag = 'input window, operand 1']
    #allocation5 [shape = 's32[2]{0}', space=sflag, size = 0x8, scoped, tag = 'scoped memory for tpu_custom_call.1']
    #allocation6 [shape = 'u8[32768]{0}', space=vmem, size = 0x8000, scoped, tag = 'input window, operand 2, single buffered']
    #allocation7 [shape = 'u8[32768]{0}', space=vmem, size = 0x8000, scoped, tag = 'input window, operand 3, single buffered']
    #allocation8 [shape = 's32[1]{0}', space=sflag, size = 0x4, scoped, tag = 'scoped memory for tpu_custom_call.1']
    #allocation9 [shape = 'u8[32768]{0}', space=vmem, size = 0x8000, scoped, tag = 'input window, operand 4, single buffered']
    #allocation10 [shape = 'u8[32768]{0}', space=vmem, size = 0x8000, scoped, tag = 'input window, operand 5, single buffered']
    #allocation11 [shape = 's32[1]{0}', space=sflag, size = 0x4, scoped, tag = 'scoped memory for tpu_custom_call.1']
    #allocation12 [shape = 'u8[32768]{0}', space=vmem, size = 0x8000, scoped, tag = 'input window, operand 6, single buffered']
    #allocation13 [shape = 'u8[32768]{0}', space=vmem, size = 0x8000, scoped, tag = 'input window, operand 7, single buffered']
    #allocation14 [shape = 's32[1]{0}', space=sflag, size = 0x4, scoped, tag = 'scoped memory for tpu_custom_call.1']
    #allocation15 [shape = 'u8[8192]{0}', space=vmem, size = 0x2000, scoped, tag = 'input window, operand 8, single buffered']
    %14 = vsyncpa [#allocation3], 0
    %s15 = scalar_lea.sflag [#allocation3], 1
    %16 = vsyncpa %s15, 0
    %17 = vsyncpa [#allocation5], 0
    %s18 = scalar_lea.sflag [#allocation5], 1
    %19 = vsyncpa %s18, 0
    %20 = vsyncpa [#allocation8], 0
    %21 = vsyncpa [#allocation11], 0
    %22 = vsyncpa [#allocation14], 0
    loop: start=0, step=1, limit=5
    $region2: #{tpu_custom_call.1} parent=1 // loop_pre_header
      _
    $region3: #{tpu_custom_call.1} parent=1 // loop_header
      %s24 = sphi 0, %s28
      %p25 = scmp.ge.s32.totalorder %s24, 5
      %s34 = sphi 0, %s36
      %s37 = sphi 0, %s34
      %s38 = sphi 0, %s37
      %s54 = sphi 0, %s38
      %s60 = sphi 0, %s62
      %s63 = sphi 0, %s60
      %s64 = sphi 0, %s63
      %s80 = sphi 0, %s64
      %s84 = sphi 0, %s84
      %s86 = sphi 0, %s84
      %s87 = sphi 0, %s86
      %s101 = sphi 0, %s87
      %s105 = sphi 0, %s105
      %s107 = sphi 0, %s105
      %s108 = sphi 0, %s107
      %s122 = sphi 0, %s108
      %s126 = sphi 0, %s126
      %s128 = sphi 0, %s126
      %s129 = sphi 0, %s128
      %s143 = sphi 0, %s129
      %s147 = sphi 0, %s147
      %s149 = sphi 0, %s147
      %s150 = sphi 0, %s149
      %s164 = sphi 0, %s150
      %s168 = sphi 0, %s168
      %s170 = sphi 0, %s168
      %s171 = sphi 0, %s170
      %s185 = sphi 0, %s171
      %s189 = sphi 0, %s189
      %s191 = sphi 0, %s189
      %s192 = sphi 0, %s191
      %s206 = sphi 0, %s192
      %s210 = sphi 0, %s210
      %s212 = sphi 0, %s210
      %s213 = sphi 0, %s212
      %s227 = sphi 0, %s213
      %s233 = sphi 0, %s235
      %s236 = sphi 0, %s233
      %s237 = sphi 0, %s236
      %s253 = sphi 0, %s237
    $region4: #{tpu_custom_call.1} parent=1 // loop_header_branch
      %27 = sbr.rel (%p25) target = $region8
    $region5: #{tpu_custom_call.1} parent=1 // loop_body
      %s29 = ssub.s32 %s24, 1
      %s30 = ssub.s32 %s24, 2
      %s31 = sadd.s32 %s24, 1
      %s32 = ssub.s32 %s24, %s31
      %p33 = scmp.eq.s32.totalorder %s32, 0
      %s35 = sadd.s32 %s34, 1
      %s36 = scalar_select %p33, %s34, %s35
      %p39 = pneg %p33
      %p40 = scmp.eq.s32.totalorder %s24, 2
      %p41 = por %p39, %p40
      %p42 = scmp.ne.s32.totalorder %s34, %s37
      %p43 = scmp.eq.s32.totalorder %s24, 0
      %p44 = por %p42, %p43
      %p45 = scmp.ne.s32.totalorder %s34, %s37
      %p46 = scmp.eq.s32.totalorder %s29, 2
      %p47 = por %p45, %p46
      %p48 = scmp.ne.s32.totalorder %s37, %s38
      %p49 = scmp.eq.s32.totalorder %s29, 0
      %p50 = por %p48, %p49
      %p51 = scmp.ne.s32.totalorder %s37, %s38
      %p52 = scmp.eq.s32.totalorder %s30, 2
      %p53 = por %p51, %p52
      %p55 = scmp.ne.s32.totalorder %s38, %s54
      %p56 = scmp.eq.s32.totalorder %s30, 0
      %p57 = por %p55, %p56
      %s58 = ssub.s32 %s24, %s31
      %p59 = scmp.eq.s32.totalorder %s58, 0
      %s61 = sadd.s32 %s60, 1
      %s62 = scalar_select %p59, %s60, %s61
      %p65 = pneg %p59
      %p66 = scmp.eq.s32.totalorder %s24, 2
      %p67 = por %p65, %p66
      %p68 = scmp.ne.s32.totalorder %s60, %s63
      %p69 = scmp.eq.s32.totalorder %s24, 0
      %p70 = por %p68, %p69
      %p71 = scmp.ne.s32.totalorder %s60, %s63
      %p72 = scmp.eq.s32.totalorder %s29, 2
      %p73 = por %p71, %p72
      %p74 = scmp.ne.s32.totalorder %s63, %s64
      %p75 = scmp.eq.s32.totalorder %s29, 0
      %p76 = por %p74, %p75
      %p77 = scmp.ne.s32.totalorder %s63, %s64
      %p78 = scmp.eq.s32.totalorder %s30, 2
      %p79 = por %p77, %p78
      %p81 = scmp.ne.s32.totalorder %s64, %s80
      %p82 = scmp.eq.s32.totalorder %s30, 0
      %p83 = por %p81, %p82
      %s85 = sadd.s32 %s84, 1
      %p88 = scmp.eq.s32.totalorder %s24, 2
      %p89 = scmp.ne.s32.totalorder %s84, %s86
      %p90 = scmp.eq.s32.totalorder %s24, 0
      %p91 = por %p89, %p90
      %p92 = scmp.ne.s32.totalorder %s84, %s86
      %p93 = scmp.eq.s32.totalorder %s29, 2
      %p94 = por %p92, %p93
      %p95 = scmp.ne.s32.totalorder %s86, %s87
      %p96 = scmp.eq.s32.totalorder %s29, 0
      %p97 = por %p95, %p96
      %p98 = scmp.ne.s32.totalorder %s86, %s87
      %p99 = scmp.eq.s32.totalorder %s30, 2
      %p100 = por %p98, %p99
      %p102 = scmp.ne.s32.totalorder %s87, %s101
      %p103 = scmp.eq.s32.totalorder %s30, 0
      %p104 = por %p102, %p103
      %s106 = sadd.s32 %s105, 1
      %p109 = scmp.eq.s32.totalorder %s24, 2
      %p110 = scmp.ne.s32.totalorder %s105, %s107
      %p111 = scmp.eq.s32.totalorder %s24, 0
      %p112 = por %p110, %p111
      %p113 = scmp.ne.s32.totalorder %s105, %s107
      %p114 = scmp.eq.s32.totalorder %s29, 2
      %p115 = por %p113, %p114
      %p116 = scmp.ne.s32.totalorder %s107, %s108
      %p117 = scmp.eq.s32.totalorder %s29, 0
      %p118 = por %p116, %p117
      %p119 = scmp.ne.s32.totalorder %s107, %s108
      %p120 = scmp.eq.s32.totalorder %s30, 2
      %p121 = por %p119, %p120
      %p123 = scmp.ne.s32.totalorder %s108, %s122
      %p124 = scmp.eq.s32.totalorder %s30, 0
      %p125 = por %p123, %p124
      %s127 = sadd.s32 %s126, 1
      %p130 = scmp.eq.s32.totalorder %s24, 2
      %p131 = scmp.ne.s32.totalorder %s126, %s128
      %p132 = scmp.eq.s32.totalorder %s24, 0
      %p133 = por %p131, %p132
      %p134 = scmp.ne.s32.totalorder %s126, %s128
      %p135 = scmp.eq.s32.totalorder %s29, 2
      %p136 = por %p134, %p135
      %p137 = scmp.ne.s32.totalorder %s128, %s129
      %p138 = scmp.eq.s32.totalorder %s29, 0
      %p139 = por %p137, %p138
      %p140 = scmp.ne.s32.totalorder %s128, %s129
      %p141 = scmp.eq.s32.totalorder %s30, 2
      %p142 = por %p140, %p141
      %p144 = scmp.ne.s32.totalorder %s129, %s143
      %p145 = scmp.eq.s32.totalorder %s30, 0
      %p146 = por %p144, %p145
      %s148 = sadd.s32 %s147, 1
      %p151 = scmp.eq.s32.totalorder %s24, 2
      %p152 = scmp.ne.s32.totalorder %s147, %s149
      %p153 = scmp.eq.s32.totalorder %s24, 0
      %p154 = por %p152, %p153
      %p155 = scmp.ne.s32.totalorder %s147, %s149
      %p156 = scmp.eq.s32.totalorder %s29, 2
      %p157 = por %p155, %p156
      %p158 = scmp.ne.s32.totalorder %s149, %s150
      %p159 = scmp.eq.s32.totalorder %s29, 0
      %p160 = por %p158, %p159
      %p161 = scmp.ne.s32.totalorder %s149, %s150
      %p162 = scmp.eq.s32.totalorder %s30, 2
      %p163 = por %p161, %p162
      %p165 = scmp.ne.s32.totalorder %s150, %s164
      %p166 = scmp.eq.s32.totalorder %s30, 0
      %p167 = por %p165, %p166
      %s169 = sadd.s32 %s168, 1
      %p172 = scmp.eq.s32.totalorder %s24, 2
      %p173 = scmp.ne.s32.totalorder %s168, %s170
      %p174 = scmp.eq.s32.totalorder %s24, 0
      %p175 = por %p173, %p174
      %p176 = scmp.ne.s32.totalorder %s168, %s170
      %p177 = scmp.eq.s32.totalorder %s29, 2
      %p178 = por %p176, %p177
      %p179 = scmp.ne.s32.totalorder %s170, %s171
      %p180 = scmp.eq.s32.totalorder %s29, 0
      %p181 = por %p179, %p180
      %p182 = scmp.ne.s32.totalorder %s170, %s171
      %p183 = scmp.eq.s32.totalorder %s30, 2
      %p184 = por %p182, %p183
      %p186 = scmp.ne.s32.totalorder %s171, %s185
      %p187 = scmp.eq.s32.totalorder %s30, 0
      %p188 = por %p186, %p187
      %s190 = sadd.s32 %s189, 1
      %p193 = scmp.eq.s32.totalorder %s24, 2
      %p194 = scmp.ne.s32.totalorder %s189, %s191
      %p195 = scmp.eq.s32.totalorder %s24, 0
      %p196 = por %p194, %p195
      %p197 = scmp.ne.s32.totalorder %s189, %s191
      %p198 = scmp.eq.s32.totalorder %s29, 2
      %p199 = por %p197, %p198
      %p200 = scmp.ne.s32.totalorder %s191, %s192
      %p201 = scmp.eq.s32.totalorder %s29, 0
      %p202 = por %p200, %p201
      %p203 = scmp.ne.s32.totalorder %s191, %s192
      %p204 = scmp.eq.s32.totalorder %s30, 2
      %p205 = por %p203, %p204
      %p207 = scmp.ne.s32.totalorder %s192, %s206
      %p208 = scmp.eq.s32.totalorder %s30, 0
      %p209 = por %p207, %p208
      %s211 = sadd.s32 %s210, 1
      %p214 = scmp.eq.s32.totalorder %s24, 2
      %p215 = scmp.ne.s32.totalorder %s210, %s212
      %p216 = scmp.eq.s32.totalorder %s24, 0
      %p217 = por %p215, %p216
      %p218 = scmp.ne.s32.totalorder %s210, %s212
      %p219 = scmp.eq.s32.totalorder %s29, 2
      %p220 = por %p218, %p219
      %p221 = scmp.ne.s32.totalorder %s212, %s213
      %p222 = scmp.eq.s32.totalorder %s29, 0
      %p223 = por %p221, %p222
      %p224 = scmp.ne.s32.totalorder %s212, %s213
      %p225 = scmp.eq.s32.totalorder %s30, 2
      %p226 = por %p224, %p225
      %p228 = scmp.ne.s32.totalorder %s213, %s227
      %p229 = scmp.eq.s32.totalorder %s30, 0
      %p230 = por %p228, %p229
      %s231 = ssub.s32 %s24, %s31
      %p232 = scmp.eq.s32.totalorder %s231, 0
      %s234 = sadd.s32 %s233, 1
      %s235 = scalar_select %p232, %s233, %s234
      %p238 = pneg %p232
      %p239 = scmp.eq.s32.totalorder %s24, 2
      %p240 = por %p238, %p239
      %p241 = scmp.ne.s32.totalorder %s233, %s236
      %p242 = scmp.eq.s32.totalorder %s24, 0
      %p243 = por %p241, %p242
      %p244 = scmp.ne.s32.totalorder %s233, %s236
      %p245 = scmp.eq.s32.totalorder %s29, 2
      %p246 = por %p244, %p245
      %p247 = scmp.ne.s32.totalorder %s236, %s237
      %p248 = scmp.eq.s32.totalorder %s29, 0
      %p249 = por %p247, %p248
      %p250 = scmp.ne.s32.totalorder %s236, %s237
      %p251 = scmp.eq.s32.totalorder %s30, 2
      %p252 = por %p250, %p251
      %p254 = scmp.ne.s32.totalorder %s237, %s253
      %p255 = scmp.eq.s32.totalorder %s30, 0
      %p256 = por %p254, %p255
      %p257 = scmp.le.s32.totalorder 1, %s24
      %p258 = scmp.lt.s32.totalorder %s24, 4
      %p259 = pnand %p257, %p258
      %p260 = pneg %p259
      // Predicated region
      $region9: #{tpu_custom_call.1} parent=5 // pred_check
        _
      $region10: #{tpu_custom_call.1} parent=5 // pred_check_branch
        %262 = sbr.rel (%p259) target = $region12
      $region11: #{tpu_custom_call.1} parent=5 // pred_region
        %s263 = ssub.s32 %s24, 1
        // Predicated region
        $region13: #{tpu_custom_call.1} parent=11 // pred_check
          %p264 = pneg %p97
        $region14: #{tpu_custom_call.1} parent=11 // pred_check_branch
          %266 = sbr.rel (%p264) target = $region16
        $region15: #{tpu_custom_call.1} parent=11 // pred_region
          %s268 = ssub.s32 1024, 1024
          %269 = vsyncadd [#allocation5], %s268
          %s270 = sshll.u32 [#allocation6], 4
          %s271 = int_to_ptr.vmem [resolvable:$true] %s270
          %276 = dma.hbm_to_vmem [thread:$0]  %s2, 1024, %s271, [#allocation5], 64, 64, 4
        $region16: #{tpu_custom_call.1} parent=11 // pred_fallthru
          _
        // Predicated region
        $region17: #{tpu_custom_call.1} parent=11 // pred_check
          %p277 = pneg %p118
        $region18: #{tpu_custom_call.1} parent=11 // pred_check_branch
          %279 = sbr.rel (%p277) target = $region20
        $region19: #{tpu_custom_call.1} parent=11 // pred_region
          %s281 = ssub.s32 1024, 1024
          %282 = vsyncadd [#allocation8], %s281
          %s283 = sshll.u32 [#allocation7], 4
          %s284 = int_to_ptr.vmem [resolvable:$true] %s283
          %289 = dma.hbm_to_vmem [thread:$0]  %s3, 1024, %s284, [#allocation8], 64, 64, 4
        $region20: #{tpu_custom_call.1} parent=11 // pred_fallthru
          _
        // Predicated region
        $region21: #{tpu_custom_call.1} parent=11 // pred_check
          %p290 = pneg %p139
        $region22: #{tpu_custom_call.1} parent=11 // pred_check_branch
          %292 = sbr.rel (%p290) target = $region24
        $region23: #{tpu_custom_call.1} parent=11 // pred_region
          %s294 = ssub.s32 1024, 1024
          %295 = vsyncadd [#allocation8], %s294
          %s296 = sshll.u32 [#allocation9], 4
          %s297 = int_to_ptr.vmem [resolvable:$true] %s296
          %302 = dma.hbm_to_vmem [thread:$0]  %s4, 1024, %s297, [#allocation8], 64, 64, 4
        $region24: #{tpu_custom_call.1} parent=11 // pred_fallthru
          _
        // Predicated region
        $region25: #{tpu_custom_call.1} parent=11 // pred_check
          %p303 = pneg %p160
        $region26: #{tpu_custom_call.1} parent=11 // pred_check_branch
          %305 = sbr.rel (%p303) target = $region28
        $region27: #{tpu_custom_call.1} parent=11 // pred_region
          %s307 = ssub.s32 1024, 1024
          %308 = vsyncadd [#allocation11], %s307
          %s309 = sshll.u32 [#allocation10], 4
          %s310 = int_to_ptr.vmem [resolvable:$true] %s309
          %315 = dma.hbm_to_vmem [thread:$0]  %s5, 1024, %s310, [#allocation11], 64, 64, 4
        $region28: #{tpu_custom_call.1} parent=11 // pred_fallthru
          _
        // Predicated region
        $region29: #{tpu_custom_call.1} parent=11 // pred_check
          %p316 = pneg %p181
        $region30: #{tpu_custom_call.1} parent=11 // pred_check_branch
          %318 = sbr.rel (%p316) target = $region32
        $region31: #{tpu_custom_call.1} parent=11 // pred_region
          %s320 = ssub.s32 1024, 1024
          %321 = vsyncadd [#allocation11], %s320
          %s322 = sshll.u32 [#allocation12], 4
          %s323 = int_to_ptr.vmem [resolvable:$true] %s322
          %328 = dma.hbm_to_vmem [thread:$0]  %s6, 1024, %s323, [#allocation11], 64, 64, 4
        $region32: #{tpu_custom_call.1} parent=11 // pred_fallthru
          _
        // Predicated region
        $region33: #{tpu_custom_call.1} parent=11 // pred_check
          %p329 = pneg %p202
        $region34: #{tpu_custom_call.1} parent=11 // pred_check_branch
          %331 = sbr.rel (%p329) target = $region36
        $region35: #{tpu_custom_call.1} parent=11 // pred_region
          %s333 = ssub.s32 1024, 1024
          %334 = vsyncadd [#allocation14], %s333
          %s335 = sshll.u32 [#allocation13], 4
          %s336 = int_to_ptr.vmem [resolvable:$true] %s335
          %341 = dma.hbm_to_vmem [thread:$0]  %s7, 1024, %s336, [#allocation14], 64, 64, 4
        $region36: #{tpu_custom_call.1} parent=11 // pred_fallthru
          _
        // Predicated region
        $region37: #{tpu_custom_call.1} parent=11 // pred_check
          %p342 = pneg %p223
        $region38: #{tpu_custom_call.1} parent=11 // pred_check_branch
          %344 = sbr.rel (%p342) target = $region40
        $region39: #{tpu_custom_call.1} parent=11 // pred_region
          %s346 = ssub.s32 256, 256
          %347 = vsyncadd [#allocation14], %s346
          %s348 = sshll.u32 [#allocation15], 4
          %s349 = int_to_ptr.vmem [resolvable:$true] %s348
          %354 = dma.hbm_to_vmem [thread:$0]  %s8, 256, %s349, [#allocation14], 128, 128, 8
        $region40: #{tpu_custom_call.1} parent=11 // pred_fallthru
          _
      $region12: #{tpu_custom_call.1} parent=5 // pred_fallthru
        _
      %p355 = scmp.lt.s32.totalorder %s24, 3
      // Predicated region
      $region41: #{tpu_custom_call.1} parent=5 // pred_check
        %p356 = pneg %p355
      $region42: #{tpu_custom_call.1} parent=5 // pred_check_branch
        %358 = sbr.rel (%p356) target = $region44
      $region43: #{tpu_custom_call.1} parent=5 // pred_region
        // Predicated region
        $region45: #{tpu_custom_call.1} parent=43 // pred_check
          %p359 = pneg %p44
        $region46: #{tpu_custom_call.1} parent=43 // pred_check_branch
          %361 = sbr.rel (%p359) target = $region48
        $region47: #{tpu_custom_call.1} parent=43 // pred_region
          %s362 = sand.u32 %s34, 1
          %s363 = scalar_lea.sflag [#allocation3], %s362
          %s364 = sand.u32 %s34, 1
          %s365 = smul.addr %s364, 8
          %s366 = scalar_lea.vmem [#allocation2], %s365
          %s367 = smul.u32 2, %s24
          %s369 = ssub.s32 128, 128
          %370 = vsyncadd %s363, %s369
          %s371 = smul.addr %s367, 64
          %s372 = scalar_lea.hbm %s0, %s371
          %s373 = sshll.u32 %s366, 4
          %s374 = int_to_ptr.vmem [resolvable:$true] %s373
          %379 = dma.hbm_to_vmem [thread:$0]  %s372, 128, %s374, %s363, 64, 64, 4
        $region48: #{tpu_custom_call.1} parent=43 // pred_fallthru
          _
        // Predicated region
        $region49: #{tpu_custom_call.1} parent=43 // pred_check
          %p380 = pneg %p70
        $region50: #{tpu_custom_call.1} parent=43 // pred_check_branch
          %382 = sbr.rel (%p380) target = $region52
        $region51: #{tpu_custom_call.1} parent=43 // pred_region
          %s383 = sand.u32 %s24, 1
          %s384 = scalar_lea.sflag [#allocation5], %s383
          %s385 = sand.u32 %s60, 1
          %s386 = smul.addr %s385, 8
          %s387 = scalar_lea.vmem [#allocation4], %s386
          %s388 = smul.u32 2, %s24
          %s390 = ssub.s32 128, 128
          %391 = vsyncadd %s384, %s390
          %s392 = smul.addr %s388, 64
          %s393 = scalar_lea.hbm %s1, %s392
          %s394 = sshll.u32 %s387, 4
          %s395 = int_to_ptr.vmem [resolvable:$true] %s394
          %400 = dma.hbm_to_vmem [thread:$0]  %s393, 128, %s395, %s384, 64, 64, 4
        $region52: #{tpu_custom_call.1} parent=43 // pred_fallthru
          _
      $region44: #{tpu_custom_call.1} parent=5 // pred_fallthru
        _
      %p401 = scmp.le.s32.totalorder 1, %s24
      %p402 = scmp.lt.s32.totalorder %s24, 4
      %p403 = pnand %p401, %p402
      %p404 = pneg %p403
      // Predicated region
      $region53: #{tpu_custom_call.1} parent=5 // pred_check
        _
      $region54: #{tpu_custom_call.1} parent=5 // pred_check_branch
        %406 = sbr.rel (%p403) target = $region56
      $region55: #{tpu_custom_call.1} parent=5 // pred_region
        %s407 = ssub.s32 %s24, 1
        %s408 = sand.u32 %s37, 1
        %s409 = scalar_lea.sflag [#allocation3], %s408
        %s410 = sand.u32 %s37, 1
        %s411 = smul.addr %s410, 8
        %s412 = scalar_lea.vmem [#allocation2], %s411
        // Predicated region
        $region57: #{tpu_custom_call.1} parent=55 // pred_check
          %p413 = pneg %p50
        $region58: #{tpu_custom_call.1} parent=55 // pred_check_branch
          %415 = sbr.rel (%p413) target = $region60
        $region59: #{tpu_custom_call.1} parent=55 // pred_region
          %416 = dma.done %s409, 128
        $region60: #{tpu_custom_call.1} parent=55 // pred_fallthru
          _
        %s417 = sand.u32 %s29, 1
        %s418 = scalar_lea.sflag [#allocation5], %s417
        %s419 = sand.u32 %s63, 1
        %s420 = smul.addr %s419, 8
        %s421 = scalar_lea.vmem [#allocation4], %s420
        // Predicated region
        $region61: #{tpu_custom_call.1} parent=55 // pred_check
          %p422 = pneg %p76
        $region62: #{tpu_custom_call.1} parent=55 // pred_check_branch
          %424 = sbr.rel (%p422) target = $region64
        $region63: #{tpu_custom_call.1} parent=55 // pred_region
          %425 = dma.done %s418, 128
        $region64: #{tpu_custom_call.1} parent=55 // pred_fallthru
          _
        // Predicated region
        $region65: #{tpu_custom_call.1} parent=55 // pred_check
          %p426 = pneg %p97
        $region66: #{tpu_custom_call.1} parent=55 // pred_check_branch
          %428 = sbr.rel (%p426) target = $region68
        $region67: #{tpu_custom_call.1} parent=55 // pred_region
          %429 = dma.done [#allocation5], 1024
        $region68: #{tpu_custom_call.1} parent=55 // pred_fallthru
          _
        // Predicated region
        $region69: #{tpu_custom_call.1} parent=55 // pred_check
          %p430 = pneg %p118
        $region70: #{tpu_custom_call.1} parent=55 // pred_check_branch
          %432 = sbr.rel (%p430) target = $region72
        $region71: #{tpu_custom_call.1} parent=55 // pred_region
          %433 = dma.done [#allocation8], 1024
        $region72: #{tpu_custom_call.1} parent=55 // pred_fallthru
          _
        // Predicated region
        $region73: #{tpu_custom_call.1} parent=55 // pred_check
          %p434 = pneg %p139
        $region74: #{tpu_custom_call.1} parent=55 // pred_check_branch
          %436 = sbr.rel (%p434) target = $region76
        $region75: #{tpu_custom_call.1} parent=55 // pred_region
          %437 = dma.done [#allocation8], 1024
        $region76: #{tpu_custom_call.1} parent=55 // pred_fallthru
          _
        // Predicated region
        $region77: #{tpu_custom_call.1} parent=55 // pred_check
          %p438 = pneg %p160
        $region78: #{tpu_custom_call.1} parent=55 // pred_check_branch
          %440 = sbr.rel (%p438) target = $region80
        $region79: #{tpu_custom_call.1} parent=55 // pred_region
          %441 = dma.done [#allocation11], 1024
        $region80: #{tpu_custom_call.1} parent=55 // pred_fallthru
          _
        // Predicated region
        $region81: #{tpu_custom_call.1} parent=55 // pred_check
          %p442 = pneg %p181
        $region82: #{tpu_custom_call.1} parent=55 // pred_check_branch
          %444 = sbr.rel (%p442) target = $region84
        $region83: #{tpu_custom_call.1} parent=55 // pred_region
          %445 = dma.done [#allocation11], 1024
        $region84: #{tpu_custom_call.1} parent=55 // pred_fallthru
          _
        // Predicated region
        $region85: #{tpu_custom_call.1} parent=55 // pred_check
          %p446 = pneg %p202
        $region86: #{tpu_custom_call.1} parent=55 // pred_check_branch
          %448 = sbr.rel (%p446) target = $region88
        $region87: #{tpu_custom_call.1} parent=55 // pred_region
          %449 = dma.done [#allocation14], 1024
        $region88: #{tpu_custom_call.1} parent=55 // pred_fallthru
          _
        // Predicated region
        $region89: #{tpu_custom_call.1} parent=55 // pred_check
          %p450 = pneg %p223
        $region90: #{tpu_custom_call.1} parent=55 // pred_check_branch
          %452 = sbr.rel (%p450) target = $region92
        $region91: #{tpu_custom_call.1} parent=55 // pred_region
          %453 = dma.done [#allocation14], 256
        $region92: #{tpu_custom_call.1} parent=55 // pred_fallthru
          _
        %s454 = sand.u32 %s37, 1
        %s455 = scalar_lea.sflag [#allocation3], %s454
        %s456 = sand.u32 %s37, 1
        %s457 = smul.addr %s456, 8
        %s458 = scalar_lea.vmem [#allocation2], %s457
        %p459 = pneg %p50
        %p460 = pneg %p47
        %s461 = sand.u32 %s29, 1
        %s462 = scalar_lea.sflag [#allocation5], %s461
        %s463 = sand.u32 %s63, 1
        %s464 = smul.addr %s463, 8
        %s465 = scalar_lea.vmem [#allocation4], %s464
        %p466 = pneg %p76
        %p467 = pneg %p73
        %p468 = pneg %p97
        %p469 = pneg %p94
        %p470 = pneg %p118
        %p471 = pneg %p115
        %p472 = pneg %p139
        %p473 = pneg %p136
        %p474 = pneg %p160
        %p475 = pneg %p157
        %p476 = pneg %p181
        %p477 = pneg %p178
        %p478 = pneg %p202
        %p479 = pneg %p199
        %p480 = pneg %p223
        %p481 = pneg %p220
        %p482 = pneg %p249
        %p483 = pneg %p246
        %s484 = smul.u32 2, %s29
        %p485 = scmp.lt.s32.totalorder %s484, 5
        %s486 = scalar_select %p485, %s484, 5
        %s487 = smul.addr %s486, 8
        %s488 = scalar_lea.vmem %s9, %s487
        %s489 = smul.u32 2, %s29
        %s490 = smul.u32 2, %s29
        %s491 = smul.u32 2, %s29
        %p492 = scmp.lt.s32.totalorder %s491, 5
        %s493 = scalar_select %p492, %s491, 5
        %s494 = smul.addr %s493, 8
        %s495 = scalar_lea.vmem %s9, %s494
        %s496 = smul.u32 2, %s29
        %v498 = vld [vmem:[#allocation15] sm:$0xff]
        %v499 = vld [vmem:[#allocation15 + $0x8] sm:$0x7]
        %v500 = vld [vmem:[%s412] sm:$0xf]
        %v501 = vld [vmem:[%s412 + $0x4] sm:$0xf]
        %v502 = vld [vmem:[#allocation6] sm:$0xf]
        %v503 = vld [vmem:[#allocation6 + $0x4] sm:$0xf]
        %v504 = vld [vmem:[#allocation6 + $0x8] sm:$0xf]
        %v505 = vld [vmem:[#allocation6 + $0xc] sm:$0xf]
        %v506 = vld [vmem:[#allocation6 + $0x10] sm:$0xf]
        %v507 = vld [vmem:[#allocation6 + $0x14] sm:$0xf]
        %v508 = vld [vmem:[#allocation6 + $0x18] sm:$0xf]
        %v509 = vld [vmem:[#allocation6 + $0x1c] sm:$0xf]
        %v510 = vld [vmem:[#allocation6 + $0x20] sm:$0xf]
        %v511 = vld [vmem:[#allocation6 + $0x24] sm:$0xf]
        %v512 = vld [vmem:[#allocation6 + $0x28] sm:$0xf]
        %v513 = vld [vmem:[#allocation6 + $0x2c] sm:$0xf]
        %v514 = vld [vmem:[#allocation6 + $0x30] sm:$0xf]
        %v515 = vld [vmem:[#allocation6 + $0x34] sm:$0xf]
        %v516 = vld [vmem:[#allocation6 + $0x38] sm:$0xf]
        %v517 = vld [vmem:[#allocation6 + $0x3c] sm:$0xf]
        %v518 = vlaneseq
        %v519 = vshrl.u32 %v518, 7
        %v520 = vsub.s32 0, %v519
        %v521 = vrot.slane %v498, %v520
        %v524 = vunpack.c.l.b16 %v500
        %v525 = vunpack.c.l.b16 %v501
        %v526 = vpack.c.b16 %v525, %v524
        %v544 = vunpack.c.l.b16 %v502
        %v545 = vunpack.c.l.b16 %v503
        %v546 = vunpack.c.l.b16 %v504
        %v547 = vunpack.c.l.b16 %v505
        %v548 = vunpack.c.l.b16 %v506
        %v549 = vunpack.c.l.b16 %v507
        %v550 = vunpack.c.l.b16 %v508
        %v551 = vunpack.c.l.b16 %v509
        %v552 = vunpack.c.l.b16 %v510
        %v553 = vunpack.c.l.b16 %v511
        %v554 = vunpack.c.l.b16 %v512
        %v555 = vunpack.c.l.b16 %v513
        %v556 = vunpack.c.l.b16 %v514
        %v557 = vunpack.c.l.b16 %v515
        %v558 = vunpack.c.l.b16 %v516
        %v559 = vunpack.c.l.b16 %v517
        %v560 = vpack.c.b16 %v545, %v544
        %v561 = vpack.c.b16 %v547, %v546
        %v562 = vpack.c.b16 %v549, %v548
        %v563 = vpack.c.b16 %v551, %v550
        %v564 = vpack.c.b16 %v553, %v552
        %v565 = vpack.c.b16 %v555, %v554
        %v566 = vpack.c.b16 %v557, %v556
        %v567 = vpack.c.b16 %v559, %v558
        %576 = vmatprep.subr.bf16.mxu0 0
        %577 = vmatpush1.bf16.msra.mxu0 %v567
        %578 = vmatprep.subr.bf16.mxu0 0
        %579 = vmatpush1.bf16.msra.mxu0 %v566
        %580 = vmatprep.subr.bf16.mxu0 0
        %581 = vmatpush1.bf16.msra.mxu0 %v565
        %582 = vmatprep.subr.bf16.mxu0 0
        %583 = vmatpush1.bf16.msra.mxu0 %v564
        %584 = vmatprep.subr.bf16.mxu0 0
        %585 = vmatpush1.bf16.msra.mxu0 %v563
        %586 = vmatprep.subr.bf16.mxu0 0
        %587 = vmatpush1.bf16.msra.mxu0 %v562
        %588 = vmatprep.subr.bf16.mxu0 0
        %589 = vmatpush1.bf16.msra.mxu0 %v561
        %590 = vmatprep.subr.bf16.mxu0 0
        %591 = vmatpush1.bf16.msra.mxu0 %v560
        %592 = vmatprep.subr.bf16.mxu0 0
        %593 = vmatpush2.bf16.msra.mxu0 0
        %594 = vmatprep.subr.bf16.mxu0 0
        %595 = vmatpush2.bf16.msra.mxu0 0
        %596 = vmatprep.subr.bf16.mxu0 0
        %597 = vmatpush2.bf16.msra.mxu0 0
        %598 = vmatprep.subr.bf16.mxu0 0
        %599 = vmatpush2.bf16.msra.mxu0 0
        %600 = vmatprep.subr.bf16.mxu0 0
        %601 = vmatpush2.bf16.msra.mxu0 0
        %602 = vmatprep.subr.bf16.mxu0 0
        %603 = vmatpush2.bf16.msra.mxu0 0
        %604 = vmatprep.subr.bf16.mxu0 0
        %605 = vmatpush2.bf16.msra.mxu0 0
        %606 = vmatprep.subr.bf16.mxu0 0
        %607 = vmatpush2.bf16.msra.mxu0 0
        %608 = vmatprep.mubr.bf16.mxu0 0
        %609 = vmatmul.mubr.bf16.gmra.mxu0 %v526
        %v610 = vpop.f32.mrf.mxu0
        %v611 = vadd.f32 %v521, %v610
        %v612 = vpop.f32.mrf.mxu0
        %v613 = vpop.f32.mrf.mxu0
        %v614 = vadd.f32 %v521, %v613
        %v615 = vpop.f32.mrf.mxu0
        %616 = vdwg.mxu0
        %v617 = vmax.f32 %v611, 0.0
        %v618 = vmax.f32 %v614, 0.0
        %v619 = vpack.c.bf16 %v618, %v617
        %v620 = vld [vmem:[#allocation9] sm:$0xf]
        %v621 = vld [vmem:[#allocation9 + $0x4] sm:$0xf]
        %v622 = vld [vmem:[#allocation9 + $0x8] sm:$0xf]
        %v623 = vld [vmem:[#allocation9 + $0xc] sm:$0xf]
        %v624 = vld [vmem:[#allocation9 + $0x10] sm:$0xf]
        %v625 = vld [vmem:[#allocation9 + $0x14] sm:$0xf]
        %v626 = vld [vmem:[#allocation9 + $0x18] sm:$0xf]
        %v627 = vld [vmem:[#allocation9 + $0x1c] sm:$0xf]
        %v628 = vld [vmem:[#allocation9 + $0x20] sm:$0xf]
        %v629 = vld [vmem:[#allocation9 + $0x24] sm:$0xf]
        %v630 = vld [vmem:[#allocation9 + $0x28] sm:$0xf]
        %v631 = vld [vmem:[#allocation9 + $0x2c] sm:$0xf]
        %v632 = vld [vmem:[#allocation9 + $0x30] sm:$0xf]
        %v633 = vld [vmem:[#allocation9 + $0x34] sm:$0xf]
        %v634 = vld [vmem:[#allocation9 + $0x38] sm:$0xf]
        %v635 = vld [vmem:[#allocation9 + $0x3c] sm:$0xf]
        %v636 = vlaneseq
        %v637 = vshrl.u32 %v636, 7
        %v638 = vsub.s32 2, %v637
        %v639 = vrot.slane %v498, %v638
        %v656 = vunpack.c.l.b16 %v620
        %v657 = vunpack.c.l.b16 %v621
        %v658 = vunpack.c.l.b16 %v622
        %v659 = vunpack.c.l.b16 %v623
        %v660 = vunpack.c.l.b16 %v624
        %v661 = vunpack.c.l.b16 %v625
        %v662 = vunpack.c.l.b16 %v626
        %v663 = vunpack.c.l.b16 %v627
        %v664 = vunpack.c.l.b16 %v628
        %v665 = vunpack.c.l.b16 %v629
        %v666 = vunpack.c.l.b16 %v630
        %v667 = vunpack.c.l.b16 %v631
        %v668 = vunpack.c.l.b16 %v632
        %v669 = vunpack.c.l.b16 %v633
        %v670 = vunpack.c.l.b16 %v634
        %v671 = vunpack.c.l.b16 %v635
        %v672 = vpack.c.b16 %v657, %v656
        %v673 = vpack.c.b16 %v659, %v658
        %v674 = vpack.c.b16 %v661, %v660
        %v675 = vpack.c.b16 %v663, %v662
        %v676 = vpack.c.b16 %v665, %v664
        %v677 = vpack.c.b16 %v667, %v666
        %v678 = vpack.c.b16 %v669, %v668
        %v679 = vpack.c.b16 %v671, %v670
        %688 = vmatprep.subr.bf16.mxu0 0
        %689 = vmatpush1.bf16.msra.mxu0 %v679
        %690 = vmatprep.subr.bf16.mxu0 0
        %691 = vmatpush1.bf16.msra.mxu0 %v678
        %692 = vmatprep.subr.bf16.mxu0 0
        %693 = vmatpush1.bf16.msra.mxu0 %v677
        %694 = vmatprep.subr.bf16.mxu0 0
        %695 = vmatpush1.bf16.msra.mxu0 %v676
        %696 = vmatprep.subr.bf16.mxu0 0
        %697 = vmatpush1.bf16.msra.mxu0 %v675
        %698 = vmatprep.subr.bf16.mxu0 0
        %699 = vmatpush1.bf16.msra.mxu0 %v674
        %700 = vmatprep.subr.bf16.mxu0 0
        %701 = vmatpush1.bf16.msra.mxu0 %v673
        %702 = vmatprep.subr.bf16.mxu0 0
        %703 = vmatpush1.bf16.msra.mxu0 %v672
        %704 = vmatprep.subr.bf16.mxu0 0
        %705 = vmatpush2.bf16.msra.mxu0 0
        %706 = vmatprep.subr.bf16.mxu0 0
        %707 = vmatpush2.bf16.msra.mxu0 0
        %708 = vmatprep.subr.bf16.mxu0 0
        %709 = vmatpush2.bf16.msra.mxu0 0
        %710 = vmatprep.subr.bf16.mxu0 0
        %711 = vmatpush2.bf16.msra.mxu0 0
        %712 = vmatprep.subr.bf16.mxu0 0
        %713 = vmatpush2.bf16.msra.mxu0 0
        %714 = vmatprep.subr.bf16.mxu0 0
        %715 = vmatpush2.bf16.msra.mxu0 0
        %716 = vmatprep.subr.bf16.mxu0 0
        %717 = vmatpush2.bf16.msra.mxu0 0
        %718 = vmatprep.subr.bf16.mxu0 0
        %719 = vmatpush2.bf16.msra.mxu0 0
        %720 = vmatprep.mubr.bf16.mxu0 0
        %721 = vmatmul.mubr.bf16.gmra.mxu0 %v619
        %v722 = vpop.f32.mrf.mxu0
        %v723 = vadd.f32 %v639, %v722
        %v724 = vpop.f32.mrf.mxu0
        %v725 = vpop.f32.mrf.mxu0
        %v726 = vadd.f32 %v639, %v725
        %v727 = vpop.f32.mrf.mxu0
        %728 = vdwg.mxu0
        %729 = vadd.xlane.f32.xlu0 %v723
        %v730 = vpop.xlane.xlu0 %729
        %731 = vadd.xlane.f32.xlu0 %v726
        %v732 = vpop.xlane.xlu0 %731
        %v733 = vrcp.pop 128.0
        %v734 = vmul.f32 %v730, %v733
        %v735 = vmul.f32 %v732, %v733
        %v736 = vsub.f32 %v723, %v734
        %v737 = vsub.f32 %v726, %v735
        %v738 = vmul.f32 %v736, %v736
        %v739 = vmul.f32 %v737, %v737
        %740 = vadd.xlane.f32.xlu0 %v738
        %v741 = vpop.xlane.xlu0 %740
        %742 = vadd.xlane.f32.xlu0 %v739
        %v743 = vpop.xlane.xlu0 %742
        %v744 = vmul.f32 %v741, %v733
        %v745 = vmul.f32 %v743, %v733
        %v746 = vadd.f32 %v744, 1e-05
        %v747 = vadd.f32 %v745, 1e-05
        %v748 = vrsqrt.pop %v746
        %v749 = vrsqrt.pop %v747
        %v750 = vmul.f32 %v736, %v748
        %v751 = vmul.f32 %v737, %v749
        %v752 = vlaneseq
        %v753 = vshrl.u32 %v752, 7
        %v754 = vsub.s32 4, %v753
        %v755 = vrot.slane %v498, %v754
        %v756 = vmul.f32 %v750, %v755
        %v757 = vmul.f32 %v751, %v755
        %v758 = vlaneseq
        %v759 = vshrl.u32 %v758, 7
        %v760 = vsub.s32 6, %v759
        %v761 = vrot.slane %v498, %v760
        %v762 = vadd.f32 %v756, %v761
        %v763 = vadd.f32 %v757, %v761
        %v764 = vld [vmem:[%s421] sm:$0xf]
        %v765 = vld [vmem:[%s421 + $0x4] sm:$0xf]
        %v766 = vld [vmem:[#allocation7] sm:$0xf]
        %v767 = vld [vmem:[#allocation7 + $0x4] sm:$0xf]
        %v768 = vld [vmem:[#allocation7 + $0x8] sm:$0xf]
        %v769 = vld [vmem:[#allocation7 + $0xc] sm:$0xf]
        %v770 = vld [vmem:[#allocation7 + $0x10] sm:$0xf]
        %v771 = vld [vmem:[#allocation7 + $0x14] sm:$0xf]
        %v772 = vld [vmem:[#allocation7 + $0x18] sm:$0xf]
        %v773 = vld [vmem:[#allocation7 + $0x1c] sm:$0xf]
        %v774 = vld [vmem:[#allocation7 + $0x20] sm:$0xf]
        %v775 = vld [vmem:[#allocation7 + $0x24] sm:$0xf]
        %v776 = vld [vmem:[#allocation7 + $0x28] sm:$0xf]
        %v777 = vld [vmem:[#allocation7 + $0x2c] sm:$0xf]
        %v778 = vld [vmem:[#allocation7 + $0x30] sm:$0xf]
        %v779 = vld [vmem:[#allocation7 + $0x34] sm:$0xf]
        %v780 = vld [vmem:[#allocation7 + $0x38] sm:$0xf]
        %v781 = vld [vmem:[#allocation7 + $0x3c] sm:$0xf]
        %v782 = vlaneseq
        %v783 = vshrl.u32 %v782, 7
        %v784 = vsub.s32 1, %v783
        %v785 = vrot.slane %v498, %v784
        %v788 = vunpack.c.l.b16 %v764
        %v789 = vunpack.c.l.b16 %v765
        %v790 = vpack.c.b16 %v789, %v788
        %v808 = vunpack.c.l.b16 %v766
        %v809 = vunpack.c.l.b16 %v767
        %v810 = vunpack.c.l.b16 %v768
        %v811 = vunpack.c.l.b16 %v769
        %v812 = vunpack.c.l.b16 %v770
        %v813 = vunpack.c.l.b16 %v771
        %v814 = vunpack.c.l.b16 %v772
        %v815 = vunpack.c.l.b16 %v773
        %v816 = vunpack.c.l.b16 %v774
        %v817 = vunpack.c.l.b16 %v775
        %v818 = vunpack.c.l.b16 %v776
        %v819 = vunpack.c.l.b16 %v777
        %v820 = vunpack.c.l.b16 %v778
        %v821 = vunpack.c.l.b16 %v779
        %v822 = vunpack.c.l.b16 %v780
        %v823 = vunpack.c.l.b16 %v781
        %v824 = vpack.c.b16 %v809, %v808
        %v825 = vpack.c.b16 %v811, %v810
        %v826 = vpack.c.b16 %v813, %v812
        %v827 = vpack.c.b16 %v815, %v814
        %v828 = vpack.c.b16 %v817, %v816
        %v829 = vpack.c.b16 %v819, %v818
        %v830 = vpack.c.b16 %v821, %v820
        %v831 = vpack.c.b16 %v823, %v822
        %840 = vmatprep.subr.bf16.mxu0 0
        %841 = vmatpush1.bf16.msra.mxu0 %v831
        %842 = vmatprep.subr.bf16.mxu0 0
        %843 = vmatpush1.bf16.msra.mxu0 %v830
        %844 = vmatprep.subr.bf16.mxu0 0
        %845 = vmatpush1.bf16.msra.mxu0 %v829
        %846 = vmatprep.subr.bf16.mxu0 0
        %847 = vmatpush1.bf16.msra.mxu0 %v828
        %848 = vmatprep.subr.bf16.mxu0 0
        %849 = vmatpush1.bf16.msra.mxu0 %v827
        %850 = vmatprep.subr.bf16.mxu0 0
        %851 = vmatpush1.bf16.msra.mxu0 %v826
        %852 = vmatprep.subr.bf16.mxu0 0
        %853 = vmatpush1.bf16.msra.mxu0 %v825
        %854 = vmatprep.subr.bf16.mxu0 0
        %855 = vmatpush1.bf16.msra.mxu0 %v824
        %856 = vmatprep.subr.bf16.mxu0 0
        %857 = vmatpush2.bf16.msra.mxu0 0
        %858 = vmatprep.subr.bf16.mxu0 0
        %859 = vmatpush2.bf16.msra.mxu0 0
        %860 = vmatprep.subr.bf16.mxu0 0
        %861 = vmatpush2.bf16.msra.mxu0 0
        %862 = vmatprep.subr.bf16.mxu0 0
        %863 = vmatpush2.bf16.msra.mxu0 0
        %864 = vmatprep.subr.bf16.mxu0 0
        %865 = vmatpush2.bf16.msra.mxu0 0
        %866 = vmatprep.subr.bf16.mxu0 0
        %867 = vmatpush2.bf16.msra.mxu0 0
        %868 = vmatprep.subr.bf16.mxu0 0
        %869 = vmatpush2.bf16.msra.mxu0 0
        %870 = vmatprep.subr.bf16.mxu0 0
        %871 = vmatpush2.bf16.msra.mxu0 0
        %872 = vmatprep.mubr.bf16.mxu0 0
        %873 = vmatmul.mubr.bf16.gmra.mxu0 %v790
        %v874 = vpop.f32.mrf.mxu0
        %v875 = vadd.f32 %v785, %v874
        %v876 = vpop.f32.mrf.mxu0
        %v877 = vpop.f32.mrf.mxu0
        %v878 = vadd.f32 %v785, %v877
        %v879 = vpop.f32.mrf.mxu0
        %880 = vdwg.mxu0
        %v881 = vmax.f32 %v875, 0.0
        %v882 = vmax.f32 %v878, 0.0
        %v883 = vpack.c.bf16 %v882, %v881
        %v884 = vld [vmem:[#allocation10] sm:$0xf]
        %v885 = vld [vmem:[#allocation10 + $0x4] sm:$0xf]
        %v886 = vld [vmem:[#allocation10 + $0x8] sm:$0xf]
        %v887 = vld [vmem:[#allocation10 + $0xc] sm:$0xf]
        %v888 = vld [vmem:[#allocation10 + $0x10] sm:$0xf]
        %v889 = vld [vmem:[#allocation10 + $0x14] sm:$0xf]
        %v890 = vld [vmem:[#allocation10 + $0x18] sm:$0xf]
        %v891 = vld [vmem:[#allocation10 + $0x1c] sm:$0xf]
        %v892 = vld [vmem:[#allocation10 + $0x20] sm:$0xf]
        %v893 = vld [vmem:[#allocation10 + $0x24] sm:$0xf]
        %v894 = vld [vmem:[#allocation10 + $0x28] sm:$0xf]
        %v895 = vld [vmem:[#allocation10 + $0x2c] sm:$0xf]
        %v896 = vld [vmem:[#allocation10 + $0x30] sm:$0xf]
        %v897 = vld [vmem:[#allocation10 + $0x34] sm:$0xf]
        %v898 = vld [vmem:[#allocation10 + $0x38] sm:$0xf]
        %v899 = vld [vmem:[#allocation10 + $0x3c] sm:$0xf]
        %v900 = vlaneseq
        %v901 = vshrl.u32 %v900, 7
        %v902 = vsub.s32 3, %v901
        %v903 = vrot.slane %v498, %v902
        %v920 = vunpack.c.l.b16 %v884
        %v921 = vunpack.c.l.b16 %v885
        %v922 = vunpack.c.l.b16 %v886
        %v923 = vunpack.c.l.b16 %v887
        %v924 = vunpack.c.l.b16 %v888
        %v925 = vunpack.c.l.b16 %v889
        %v926 = vunpack.c.l.b16 %v890
        %v927 = vunpack.c.l.b16 %v891
        %v928 = vunpack.c.l.b16 %v892
        %v929 = vunpack.c.l.b16 %v893
        %v930 = vunpack.c.l.b16 %v894
        %v931 = vunpack.c.l.b16 %v895
        %v932 = vunpack.c.l.b16 %v896
        %v933 = vunpack.c.l.b16 %v897
        %v934 = vunpack.c.l.b16 %v898
        %v935 = vunpack.c.l.b16 %v899
        %v936 = vpack.c.b16 %v921, %v920
        %v937 = vpack.c.b16 %v923, %v922
        %v938 = vpack.c.b16 %v925, %v924
        %v939 = vpack.c.b16 %v927, %v926
        %v940 = vpack.c.b16 %v929, %v928
        %v941 = vpack.c.b16 %v931, %v930
        %v942 = vpack.c.b16 %v933, %v932
        %v943 = vpack.c.b16 %v935, %v934
        %952 = vmatprep.subr.bf16.mxu0 0
        %953 = vmatpush1.bf16.msra.mxu0 %v943
        %954 = vmatprep.subr.bf16.mxu0 0
        %955 = vmatpush1.bf16.msra.mxu0 %v942
        %956 = vmatprep.subr.bf16.mxu0 0
        %957 = vmatpush1.bf16.msra.mxu0 %v941
        %958 = vmatprep.subr.bf16.mxu0 0
        %959 = vmatpush1.bf16.msra.mxu0 %v940
        %960 = vmatprep.subr.bf16.mxu0 0
        %961 = vmatpush1.bf16.msra.mxu0 %v939
        %962 = vmatprep.subr.bf16.mxu0 0
        %963 = vmatpush1.bf16.msra.mxu0 %v938
        %964 = vmatprep.subr.bf16.mxu0 0
        %965 = vmatpush1.bf16.msra.mxu0 %v937
        %966 = vmatprep.subr.bf16.mxu0 0
        %967 = vmatpush1.bf16.msra.mxu0 %v936
        %968 = vmatprep.subr.bf16.mxu0 0
        %969 = vmatpush2.bf16.msra.mxu0 0
        %970 = vmatprep.subr.bf16.mxu0 0
        %971 = vmatpush2.bf16.msra.mxu0 0
        %972 = vmatprep.subr.bf16.mxu0 0
        %973 = vmatpush2.bf16.msra.mxu0 0
        %974 = vmatprep.subr.bf16.mxu0 0
        %975 = vmatpush2.bf16.msra.mxu0 0
        %976 = vmatprep.subr.bf16.mxu0 0
        %977 = vmatpush2.bf16.msra.mxu0 0
        %978 = vmatprep.subr.bf16.mxu0 0
        %979 = vmatpush2.bf16.msra.mxu0 0
        %980 = vmatprep.subr.bf16.mxu0 0
        %981 = vmatpush2.bf16.msra.mxu0 0
        %982 = vmatprep.subr.bf16.mxu0 0
        %983 = vmatpush2.bf16.msra.mxu0 0
        %984 = vmatprep.mubr.bf16.mxu0 0
        %985 = vmatmul.mubr.bf16.gmra.mxu0 %v883
        %v986 = vpop.f32.mrf.mxu0
        %v987 = vadd.f32 %v903, %v986
        %v988 = vpop.f32.mrf.mxu0
        %v989 = vpop.f32.mrf.mxu0
        %v990 = vadd.f32 %v903, %v989
        %v991 = vpop.f32.mrf.mxu0
        %992 = vdwg.mxu0
        %993 = vadd.xlane.f32.xlu0 %v987
        %v994 = vpop.xlane.xlu0 %993
        %995 = vadd.xlane.f32.xlu0 %v990
        %v996 = vpop.xlane.xlu0 %995
        %v997 = vmul.f32 %v994, %v733
        %v998 = vmul.f32 %v996, %v733
        %v999 = vsub.f32 %v987, %v997
        %v1000 = vsub.f32 %v990, %v998
        %v1001 = vmul.f32 %v999, %v999
        %v1002 = vmul.f32 %v1000, %v1000
        %1003 = vadd.xlane.f32.xlu0 %v1001
        %v1004 = vpop.xlane.xlu0 %1003
        %1005 = vadd.xlane.f32.xlu0 %v1002
        %v1006 = vpop.xlane.xlu0 %1005
        %v1007 = vmul.f32 %v1004, %v733
        %v1008 = vmul.f32 %v1006, %v733
        %v1009 = vadd.f32 %v1007, 1e-05
        %v1010 = vadd.f32 %v1008, 1e-05
        %v1011 = vrsqrt.pop %v1009
        %v1012 = vrsqrt.pop %v1010
        %v1013 = vmul.f32 %v999, %v1011
        %v1014 = vmul.f32 %v1000, %v1012
        %v1015 = vlaneseq
        %v1016 = vshrl.u32 %v1015, 7
        %v1017 = vsub.s32 5, %v1016
        %v1018 = vrot.slane %v498, %v1017
        %v1019 = vmul.f32 %v1013, %v1018
        %v1020 = vmul.f32 %v1014, %v1018
        %v1021 = vlaneseq
        %v1022 = vshrl.u32 %v1021, 7
        %v1023 = vsub.s32 7, %v1022
        %v1024 = vrot.slane %v498, %v1023
        %v1025 = vadd.f32 %v1019, %v1024
        %v1026 = vadd.f32 %v1020, %v1024
        %v1027 = vpack.c.bf16 %v763, %v762
        %v1028 = vld [vmem:[#allocation12] sm:$0xf]
        %v1029 = vld [vmem:[#allocation12 + $0x4] sm:$0xf]
        %v1030 = vld [vmem:[#allocation12 + $0x8] sm:$0xf]
        %v1031 = vld [vmem:[#allocation12 + $0xc] sm:$0xf]
        %v1032 = vld [vmem:[#allocation12 + $0x10] sm:$0xf]
        %v1033 = vld [vmem:[#allocation12 + $0x14] sm:$0xf]
        %v1034 = vld [vmem:[#allocation12 + $0x18] sm:$0xf]
        %v1035 = vld [vmem:[#allocation12 + $0x1c] sm:$0xf]
        %v1036 = vld [vmem:[#allocation12 + $0x20] sm:$0xf]
        %v1037 = vld [vmem:[#allocation12 + $0x24] sm:$0xf]
        %v1038 = vld [vmem:[#allocation12 + $0x28] sm:$0xf]
        %v1039 = vld [vmem:[#allocation12 + $0x2c] sm:$0xf]
        %v1040 = vld [vmem:[#allocation12 + $0x30] sm:$0xf]
        %v1041 = vld [vmem:[#allocation12 + $0x34] sm:$0xf]
        %v1042 = vld [vmem:[#allocation12 + $0x38] sm:$0xf]
        %v1043 = vld [vmem:[#allocation12 + $0x3c] sm:$0xf]
        %v1044 = vpack.c.bf16 %v1026, %v1025
        %v1045 = vld [vmem:[#allocation13] sm:$0xf]
        %v1046 = vld [vmem:[#allocation13 + $0x4] sm:$0xf]
        %v1047 = vld [vmem:[#allocation13 + $0x8] sm:$0xf]
        %v1048 = vld [vmem:[#allocation13 + $0xc] sm:$0xf]
        %v1049 = vld [vmem:[#allocation13 + $0x10] sm:$0xf]
        %v1050 = vld [vmem:[#allocation13 + $0x14] sm:$0xf]
        %v1051 = vld [vmem:[#allocation13 + $0x18] sm:$0xf]
        %v1052 = vld [vmem:[#allocation13 + $0x1c] sm:$0xf]
        %v1053 = vld [vmem:[#allocation13 + $0x20] sm:$0xf]
        %v1054 = vld [vmem:[#allocation13 + $0x24] sm:$0xf]
        %v1055 = vld [vmem:[#allocation13 + $0x28] sm:$0xf]
        %v1056 = vld [vmem:[#allocation13 + $0x2c] sm:$0xf]
        %v1057 = vld [vmem:[#allocation13 + $0x30] sm:$0xf]
        %v1058 = vld [vmem:[#allocation13 + $0x34] sm:$0xf]
        %v1059 = vld [vmem:[#allocation13 + $0x38] sm:$0xf]
        %v1060 = vld [vmem:[#allocation13 + $0x3c] sm:$0xf]
        %v1077 = vunpack.c.l.b16 %v1045
        %v1078 = vunpack.c.l.b16 %v1046
        %v1079 = vunpack.c.l.b16 %v1047
        %v1080 = vunpack.c.l.b16 %v1048
        %v1081 = vunpack.c.l.b16 %v1049
        %v1082 = vunpack.c.l.b16 %v1050
        %v1083 = vunpack.c.l.b16 %v1051
        %v1084 = vunpack.c.l.b16 %v1052
        %v1085 = vunpack.c.l.b16 %v1053
        %v1086 = vunpack.c.l.b16 %v1054
        %v1087 = vunpack.c.l.b16 %v1055
        %v1088 = vunpack.c.l.b16 %v1056
        %v1089 = vunpack.c.l.b16 %v1057
        %v1090 = vunpack.c.l.b16 %v1058
        %v1091 = vunpack.c.l.b16 %v1059
        %v1092 = vunpack.c.l.b16 %v1060
        %v1093 = vpack.c.b16 %v1078, %v1077
        %v1094 = vpack.c.b16 %v1080, %v1079
        %v1095 = vpack.c.b16 %v1082, %v1081
        %v1096 = vpack.c.b16 %v1084, %v1083
        %v1097 = vpack.c.b16 %v1086, %v1085
        %v1098 = vpack.c.b16 %v1088, %v1087
        %v1099 = vpack.c.b16 %v1090, %v1089
        %v1100 = vpack.c.b16 %v1092, %v1091
        %1109 = vmatprep.subr.bf16.mxu0 0
        %1110 = vmatpush1.bf16.msra.mxu0 %v1100
        %1111 = vmatprep.subr.bf16.mxu0 0
        %1112 = vmatpush1.bf16.msra.mxu0 %v1099
        %1113 = vmatprep.subr.bf16.mxu0 0
        %1114 = vmatpush1.bf16.msra.mxu0 %v1098
        %1115 = vmatprep.subr.bf16.mxu0 0
        %1116 = vmatpush1.bf16.msra.mxu0 %v1097
        %1117 = vmatprep.subr.bf16.mxu0 0
        %1118 = vmatpush1.bf16.msra.mxu0 %v1096
        %1119 = vmatprep.subr.bf16.mxu0 0
        %1120 = vmatpush1.bf16.msra.mxu0 %v1095
        %1121 = vmatprep.subr.bf16.mxu0 0
        %1122 = vmatpush1.bf16.msra.mxu0 %v1094
        %1123 = vmatprep.subr.bf16.mxu0 0
        %1124 = vmatpush1.bf16.msra.mxu0 %v1093
        %1125 = vmatprep.subr.bf16.mxu0 0
        %1126 = vmatpush2.bf16.msra.mxu0 0
        %1127 = vmatprep.subr.bf16.mxu0 0
        %1128 = vmatpush2.bf16.msra.mxu0 0
        %1129 = vmatprep.subr.bf16.mxu0 0
        %1130 = vmatpush2.bf16.msra.mxu0 0
        %1131 = vmatprep.subr.bf16.mxu0 0
        %1132 = vmatpush2.bf16.msra.mxu0 0
        %1133 = vmatprep.subr.bf16.mxu0 0
        %1134 = vmatpush2.bf16.msra.mxu0 0
        %1135 = vmatprep.subr.bf16.mxu0 0
        %1136 = vmatpush2.bf16.msra.mxu0 0
        %1137 = vmatprep.subr.bf16.mxu0 0
        %1138 = vmatpush2.bf16.msra.mxu0 0
        %1139 = vmatprep.subr.bf16.mxu0 0
        %1140 = vmatpush2.bf16.msra.mxu0 0
        %1141 = vmatprep.mubr.bf16.mxu0 0
        %1142 = vmatmul.mubr.bf16.gmra.mxu0 %v1044
        %v1143 = vpop.f32.mrf.mxu0
        %v1144 = vadd.f32 0.0, %v1143
        %v1145 = vpop.f32.mrf.mxu0
        %v1146 = vpop.f32.mrf.mxu0
        %v1147 = vadd.f32 0.0, %v1146
        %v1148 = vpop.f32.mrf.mxu0
        %1149 = vdwg.mxu0
        %v1166 = vunpack.c.l.b16 %v1028
        %v1167 = vunpack.c.l.b16 %v1029
        %v1168 = vunpack.c.l.b16 %v1030
        %v1169 = vunpack.c.l.b16 %v1031
        %v1170 = vunpack.c.l.b16 %v1032
        %v1171 = vunpack.c.l.b16 %v1033
        %v1172 = vunpack.c.l.b16 %v1034
        %v1173 = vunpack.c.l.b16 %v1035
        %v1174 = vunpack.c.l.b16 %v1036
        %v1175 = vunpack.c.l.b16 %v1037
        %v1176 = vunpack.c.l.b16 %v1038
        %v1177 = vunpack.c.l.b16 %v1039
        %v1178 = vunpack.c.l.b16 %v1040
        %v1179 = vunpack.c.l.b16 %v1041
        %v1180 = vunpack.c.l.b16 %v1042
        %v1181 = vunpack.c.l.b16 %v1043
        %v1182 = vpack.c.b16 %v1167, %v1166
        %v1183 = vpack.c.b16 %v1169, %v1168
        %v1184 = vpack.c.b16 %v1171, %v1170
        %v1185 = vpack.c.b16 %v1173, %v1172
        %v1186 = vpack.c.b16 %v1175, %v1174
        %v1187 = vpack.c.b16 %v1177, %v1176
        %v1188 = vpack.c.b16 %v1179, %v1178
        %v1189 = vpack.c.b16 %v1181, %v1180
        %1198 = vmatprep.subr.bf16.mxu0 0
        %1199 = vmatpush1.bf16.msra.mxu0 %v1189
        %1200 = vmatprep.subr.bf16.mxu0 0
        %1201 = vmatpush1.bf16.msra.mxu0 %v1188
        %1202 = vmatprep.subr.bf16.mxu0 0
        %1203 = vmatpush1.bf16.msra.mxu0 %v1187
        %1204 = vmatprep.subr.bf16.mxu0 0
        %1205 = vmatpush1.bf16.msra.mxu0 %v1186
        %1206 = vmatprep.subr.bf16.mxu0 0
        %1207 = vmatpush1.bf16.msra.mxu0 %v1185
        %1208 = vmatprep.subr.bf16.mxu0 0
        %1209 = vmatpush1.bf16.msra.mxu0 %v1184
        %1210 = vmatprep.subr.bf16.mxu0 0
        %1211 = vmatpush1.bf16.msra.mxu0 %v1183
        %1212 = vmatprep.subr.bf16.mxu0 0
        %1213 = vmatpush1.bf16.msra.mxu0 %v1182
        %1214 = vmatprep.subr.bf16.mxu0 0
        %1215 = vmatpush2.bf16.msra.mxu0 0
        %1216 = vmatprep.subr.bf16.mxu0 0
        %1217 = vmatpush2.bf16.msra.mxu0 0
        %1218 = vmatprep.subr.bf16.mxu0 0
        %1219 = vmatpush2.bf16.msra.mxu0 0
        %1220 = vmatprep.subr.bf16.mxu0 0
        %1221 = vmatpush2.bf16.msra.mxu0 0
        %1222 = vmatprep.subr.bf16.mxu0 0
        %1223 = vmatpush2.bf16.msra.mxu0 0
        %1224 = vmatprep.subr.bf16.mxu0 0
        %1225 = vmatpush2.bf16.msra.mxu0 0
        %1226 = vmatprep.subr.bf16.mxu0 0
        %1227 = vmatpush2.bf16.msra.mxu0 0
        %1228 = vmatprep.subr.bf16.mxu0 0
        %1229 = vmatpush2.bf16.msra.mxu0 0
        %1230 = vmatprep.mubr.bf16.mxu0 0
        %1231 = vmatmul.mubr.bf16.gmra.mxu0 %v1027
        %v1232 = vpop.f32.mrf.mxu0
        %v1233 = vadd.f32 %v1144, %v1232
        %v1234 = vpop.f32.mrf.mxu0
        %v1235 = vpop.f32.mrf.mxu0
        %v1236 = vadd.f32 %v1147, %v1235
        %v1237 = vpop.f32.mrf.mxu0
        %1238 = vdwg.mxu0
        %v1239 = vlaneseq
        %v1240 = vshrl.u32 %v1239, 7
        %v1241 = vsub.s32 0, %v1240
        %v1242 = vrot.slane %v499, %v1241
        %v1243 = vadd.f32 %v1233, %v1242
        %v1244 = vadd.f32 %v1236, %v1242
        %v1245 = vmax.f32 %v1243, 0.0
        %v1246 = vmax.f32 %v1244, 0.0
        %v1247 = vlaneseq
        %v1248 = vshrl.u32 %v1247, 7
        %v1249 = vsub.s32 1, %v1248
        %v1250 = vrot.slane %v499, %v1249
        %v1251 = vmul.f32 %v1245, %v1250
        %v1252 = vmul.f32 %v1246, %v1250
        %1253 = vadd.xlane.f32.xlu0 %v1251
        %v1254 = vpop.xlane.xlu0 %1253
        %1255 = vadd.xlane.f32.xlu0 %v1252
        %v1256 = vpop.xlane.xlu0 %1255
        %v1257 = vlaneseq
        %v1258 = vshrl.u32 %v1257, 7
        %v1259 = vsub.s32 2, %v1258
        %v1260 = vrot.slane %v499, %v1259
        %v1261 = vadd.f32 %v1254, %v1260
        %v1262 = vadd.f32 %v1256, %v1260
        %vm1263 = vcmask 7168
        %1264 = vst.msk [vmem:[%s495] sm:$0xff] %vm1263, %v1261
        %1265 = vst.msk [vmem:[%s495 + $0x8] sm:$0xff] %vm1263, %v1262
        %s1266 = smul.u32 2, %s29
        %p1267 = scmp.lt.s32.totalorder %s1266, 5
        %s1268 = scalar_select %p1267, %s1266, 5
        %s1269 = smul.addr %s1268, 8
        %s1270 = scalar_lea.vmem %s9, %s1269
        // Predicated region
        $region93: #{tpu_custom_call.1} parent=55 // pred_check
          %p1271 = pneg %p246
        $region94: #{tpu_custom_call.1} parent=55 // pred_check_branch
          %1273 = sbr.rel (%p1271) target = $region96
        $region95: #{tpu_custom_call.1} parent=55 // pred_region
          %s1274 = smul.u32 2, %s29
        $region96: #{tpu_custom_call.1} parent=55 // pred_fallthru
          _
      $region56: #{tpu_custom_call.1} parent=5 // pred_fallthru
        _
      %p1275 = scmp.le.s32.totalorder 2, %s24
      // Predicated region
      $region97: #{tpu_custom_call.1} parent=5 // pred_check
        %p1276 = pneg %p1275
      $region98: #{tpu_custom_call.1} parent=5 // pred_check_branch
        %1278 = sbr.rel (%p1276) target = $region100
      $region99: #{tpu_custom_call.1} parent=5 // pred_region
        %s1279 = ssub.s32 %s24, 2
        // Predicated region
        $region101: #{tpu_custom_call.1} parent=99 // pred_check
          %p1280 = pneg %p252
        $region102: #{tpu_custom_call.1} parent=99 // pred_check_branch
          %1282 = sbr.rel (%p1280) target = $region104
        $region103: #{tpu_custom_call.1} parent=99 // pred_region
          %s1283 = smul.u32 2, %s30
          %p1284 = scmp.lt.s32.totalorder %s1283, 5
          %s1285 = scalar_select %p1284, %s1283, 5
          %s1286 = smul.addr %s1285, 8
          %s1287 = scalar_lea.vmem %s9, %s1286
        $region104: #{tpu_custom_call.1} parent=99 // pred_fallthru
          _
      $region100: #{tpu_custom_call.1} parent=5 // pred_fallthru
        _
    $region6: #{tpu_custom_call.1} parent=1 // loop_footer
      %s28 = sadd.s32 1, %s24
    $region7: #{tpu_custom_call.1} parent=1 // loop_footer_branch
      %23 = sbr.rel target = $region3
    $region8: #{tpu_custom_call.1} parent=1 // loop_exit
      _
    %1288 = vsyncpa [#allocation3], 1
    %s1289 = scalar_lea.sflag [#allocation3], 1
    %1290 = vsyncpa %s1289, 1
    %1291 = vsyncpa [#allocation5], 1
    %s1292 = scalar_lea.sflag [#allocation5], 1
    %1293 = vsyncpa %s1292, 1
    %1294 = vsyncpa [#allocation8], 1
    %1295 = vsyncpa [#allocation11], 1
    %1296 = vsyncpa [#allocation14], 1

</llo_original>
